<compile_context>
chip_gen: v6e
topology: v6e:2x2x1
jax: 0.10.0
libtpu: 0.0.40
codegen_flags: <defaults>
</compile_context>

<pallas_src>
import jax
import jax.numpy as jnp
from jax.experimental import pallas as pl
from jax.experimental.pallas import tpu as pltpu

EPS = 1e-6


def _make_nafblock_kernel(H, W, C):
    HW = H * W
    taps = [(dy, dx) for dy in range(3) for dx in range(3)]
    # flat-index shift for tap (dy, dx); tap order = 3*dy + dx (matches HWIO)
    shifts = [(dy - 1) * W + (dx - 1) for dy, dx in taps]

    def layernorm(v, w, b):
        # per-pixel LayerNorm over channels (axis 0), biased variance like torch
        mu = jnp.mean(v, axis=0, keepdims=True)
        var = jnp.mean((v - mu) ** 2, axis=0, keepdims=True)
        return w * ((v - mu) * jax.lax.rsqrt(var + EPS)) + b

    def gate(v):
        # SimpleGate: split channels in half, multiply
        h = v.shape[0] // 2
        return v[:h, :] * v[h:, :]

    def kernel(x_ref, cstack_ref, lhsc_ref,
               w1_ref, w2_ref, w3_ref, w4_ref, w5_ref,
               ln1w_ref, ln1b_ref, ln2w_ref, ln2b_ref,
               scaw_ref, scab_ref, beta_ref, gamma_ref,
               out_ref):
        x = x_ref[0]                                    # (C, HW) f32

        # ---- tap-validity masks built in-kernel (iota + compares; no HBM const) ----
        p = jax.lax.broadcasted_iota(jnp.int32, (1, HW), 1)
        if (W & (W - 1)) == 0:                          # power-of-two width: bitwise AND
            px = p & (W - 1)
        else:
            px = jax.lax.rem(p, W)
        masks = []
        for (dy, dx), k in zip(taps, shifts):
            valid = (p + k >= 0) & (p + k < HW)         # vertical / flat bounds
            if dx == 0:
                valid = valid & (px >= 1)               # no horizontal wrap (left)
            elif dx == 2:
                valid = valid & (px <= W - 2)           # no horizontal wrap (right)
            masks.append(valid.astype(jnp.float32))     # centre mask unused -> DCE'd

        # ---- coord-channel + conv-bias contribution of ALL 5 convs: one small matmul ----
        cb_all = jnp.dot(lhsc_ref[...], cstack_ref[...],
                         preferred_element_type=jnp.float32)   # (8C, HW)

        def conv3x3(v, w_ref, cb):
            # Single fused MXU matmul per conv: stack 9 rolled+masked copies of the
            # input (contraction 9*Cin), bf16 operands, f32 accumulation.
            blocks = []
            for ti, k in enumerate(shifts):
                if k == 0:
                    blocks.append(v)                     # centre tap: always valid
                else:
                    blocks.append(pltpu.roll(v, shift=(-k) % HW, axis=1) * masks[ti])
            stack = jnp.concatenate(blocks, axis=0).astype(jnp.bfloat16)
            return jnp.dot(w_ref[...], stack,
                           preferred_element_type=jnp.float32) + cb

        inp = x
        # ---- branch 1: norm1 -> conv1 -> conv2 -> SG -> SCA -> conv3 ----
        h = layernorm(x, ln1w_ref[...], ln1b_ref[...])
        h = conv3x3(h, w1_ref, cb_all[0:2 * C, :])       # (2C, HW)
        h = conv3x3(h, w2_ref, cb_all[2 * C:4 * C, :])   # (2C, HW)
        h = gate(h)                                      # (C, HW)
        pooled = jnp.mean(h, axis=1, keepdims=True)      # (C, 1)
        s = jnp.dot(scaw_ref[...], pooled,
                    preferred_element_type=jnp.float32) + scab_ref[...]
        h = h * s
        h = conv3x3(h, w3_ref, cb_all[4 * C:5 * C, :])   # (C, HW)
        y = inp + h * beta_ref[...]

        # ---- branch 2 (FFN): norm2 -> conv4 -> SG -> conv5 ----
        h = layernorm(y, ln2w_ref[...], ln2b_ref[...])
        h = conv3x3(h, w4_ref, cb_all[5 * C:7 * C, :])   # (2C, HW)
        h = gate(h)                                      # (C, HW)
        h = conv3x3(h, w5_ref, cb_all[7 * C:8 * C, :])   # (C, HW)

        out_ref[0] = y + h * gamma_ref[...]

    return kernel


def nafblock_pallas(x_nchw, coords_nchw, params):
    N, C, H, W = x_nchw.shape
    HW = H * W
    f32, bf16 = jnp.float32, jnp.bfloat16

    x = x_nchw.reshape(N, C, HW).astype(f32)
    # CoordConv coordinates are a fixed grid, identical across the batch -> one copy.
    coords = coords_nchw[0].reshape(2, HW).astype(f32)

    taps = [(dy, dx) for dy in range(3) for dx in range(3)]
    shifts = [(dy - 1) * W + (dx - 1) for dy, dx in taps]

    # SAME-padding validity masks (host side, only used for the constant coord stack).
    p = jnp.arange(HW, dtype=jnp.int32)
    px = p % W
    mask_rows = []
    for (dy, dx), k in zip(taps, shifts):
        valid = (p + k >= 0) & (p + k < HW)
        if dx == 0:
            valid = valid & (px >= 1)
        elif dx == 2:
            valid = valid & (px <= W - 2)
        mask_rows.append(valid.astype(f32))

    # Constant coord RHS stack: 9 shifted+masked copies of the 2 coord channels,
    # plus a ones row that carries each conv's bias through the same matmul.
    cblocks = [jnp.roll(coords, -k, axis=1) * mask_rows[ti][None, :]
               for ti, k in enumerate(shifts)]
    cstack = jnp.concatenate(cblocks + [jnp.ones((1, HW), f32)], axis=0).astype(bf16)  # (19, HW)

    # Data-tap weights stacked into a single (Cout, 9*Cin) matrix per conv (bf16).
    def data_lhs(w, cin):
        cout = w.shape[3]
        wd = w[:, :, :cin, :].astype(f32)                        # (3,3,cin,cout) HWIO
        return jnp.transpose(wd, (3, 0, 1, 2)).reshape(cout, 9 * cin).astype(bf16)

    # Coord-tap weights + bias column -> (Cout, 19) rows of the shared coord LHS.
    def coord_lhs(w, b, cin):
        cout = w.shape[3]
        wc = w[:, :, cin:, :].astype(f32)                        # (3,3,2,cout)
        lc = jnp.transpose(wc, (3, 0, 1, 2)).reshape(cout, 18)
        return jnp.concatenate([lc, b.astype(f32).reshape(cout, 1)], axis=1)

    cins = (C, 2 * C, C, C, C)
    wnames = ('w1', 'w2', 'w3', 'w4', 'w5')
    wmats = [data_lhs(params[w], cin) for w, cin in zip(wnames, cins)]
    lhsc = jnp.concatenate(
        [coord_lhs(params[w], params['b' + w[1]], cin) for w, cin in zip(wnames, cins)],
        axis=0).astype(bf16)                                      # (8C, 19)

    col = lambda v: v.astype(f32).reshape(-1, 1)

    args = [x, cstack, lhsc] + wmats + [
        col(params['ln1w']), col(params['ln1b']),
        col(params['ln2w']), col(params['ln2b']),
        params['scaw'].T.astype(f32), col(params['scab']),
        col(params['beta']), col(params['gamma'])]

    def const_spec(a):
        zeros = (0,) * a.ndim
        return pl.BlockSpec(a.shape, lambda n, _z=zeros: _z)      # resident after first fetch

    batch_spec = pl.BlockSpec((1, C, HW), lambda n: (n, 0, 0))

    in_specs = [batch_spec] + [const_spec(a) for a in args[1:]]

    out = pl.pallas_call(
        _make_nafblock_kernel(H, W, C),
        out_shape=jax.ShapeDtypeStruct((N, C, HW), f32),
        grid=(N,),
        in_specs=in_specs,
        out_specs=batch_spec,
        compiler_params=pltpu.CompilerParams(
            dimension_semantics=("parallel",),
            vmem_limit_bytes=48 * 1024 * 1024),
    )(*args)
    return out.reshape(N, C, H, W)


def nafblock_ref(x_nchw, coords_nchw, p):
    # pure-JAX reference (XLA conv) used only for correctness check
    x = jnp.transpose(x_nchw, (0, 2, 3, 1))
    coords = jnp.transpose(coords_nchw, (0, 2, 3, 1))

    def ln(v, w, b):
        mu = v.mean(-1, keepdims=True)
        var = ((v - mu) ** 2).mean(-1, keepdims=True)
        return w * (v - mu) / jnp.sqrt(var + EPS) + b

    def conv(v, w, b):
        o = jax.lax.conv_general_dilated(
            v, w, (1, 1), 'SAME',
            dimension_numbers=('NHWC', 'HWIO', 'NHWC'))
        return o + b

    def gate(v):
        h = v.shape[-1] // 2
        return v[..., :h] * v[..., h:]

    cc = lambda v: jnp.concatenate([v, coords], axis=-1)
    inp = x
    t = ln(x, p['ln1w'], p['ln1b'])
    t = conv(cc(t), p['w1'], p['b1'])
    t = conv(cc(t), p['w2'], p['b2'])
    t = gate(t)
    pooled = t.mean(axis=(1, 2), keepdims=True)
    s = jnp.einsum('nijc,cd->nijd', pooled, p['scaw']) + p['scab']
    t = t * s
    t = conv(cc(t), p['w3'], p['b3'])
    y = inp + t * p['beta']
    t = ln(y, p['ln2w'], p['ln2b'])
    t = conv(cc(t), p['w4'], p['b4'])
    t = gate(t)
    t = conv(cc(t), p['w5'], p['b5'])
    out = y + t * p['gamma']
    return jnp.transpose(out, (0, 3, 1, 2))


def init_params(key, c):
    dw = 2 * c
    ks = jax.random.split(key, 24)
    nrm = lambda k, shp, s=0.1: s * jax.random.normal(k, shp, jnp.float32)
    cw = lambda k, cin, cout: nrm(k, (3, 3, cin, cout))
    # NOTE: the PyTorch module inits beta/gamma to zeros and LN weight/bias to
    # ones/zeros; here they get small deterministic random values so every
    # branch of the kernel is exercised numerically.
    return dict(
        ln1w=1.0 + nrm(ks[0], (c,)), ln1b=nrm(ks[1], (c,), 0.05),
        w1=cw(ks[2], c + 2, dw),     b1=nrm(ks[3], (dw,), 0.05),
        w2=cw(ks[4], dw + 2, dw),    b2=nrm(ks[5], (dw,), 0.05),
        scaw=nrm(ks[6], (c, c)),     scab=nrm(ks[7], (c,), 0.05),
        w3=cw(ks[8], c + 2, c),      b3=nrm(ks[9], (c,), 0.05),
        beta=nrm(ks[10], (c,)),
        ln2w=1.0 + nrm(ks[11], (c,)), ln2b=nrm(ks[12], (c,), 0.05),
        w4=cw(ks[13], c + 2, dw),    b4=nrm(ks[14], (dw,), 0.05),
        w5=cw(ks[15], c + 2, c),     b5=nrm(ks[16], (c,), 0.05),
        gamma=nrm(ks[17], (c,)),
    )


if __name__ == "__main__":
    N, C, H, W = 2, 4, 16, 16
    key = jax.random.PRNGKey(0)
    k_x, k_p = jax.random.split(key)

    x = jax.random.normal(k_x, (N, C, H, W), jnp.float32)
    # CoordConv coordinate channels: normalized (x, y) grid in [-1, 1]
    ys = jnp.linspace(-1.0, 1.0, H)
    xs = jnp.linspace(-1.0, 1.0, W)
    gy, gx = jnp.meshgrid(ys, xs, indexing='ij')
    coords = jnp.broadcast_to(jnp.stack([gx, gy])[None], (N, 2, H, W)).astype(jnp.float32)

    params = init_params(k_p, C)

    out = nafblock_pallas(x, coords, params)
    out = jax.block_until_ready(out)

    ref = jax.block_until_ready(nafblock_ref(x, coords, params))
    assert out.shape == (N, C, H, W)
    assert jnp.allclose(out, ref, rtol=2e-2, atol=2e-2), (
        f"max abs diff {jnp.max(jnp.abs(out - ref))}")

    print("KERNEL_OK")
</pallas_src>

<mosaic_0001>
module attributes {stable_mosaic.version = 11 : i64} {
  func.func @kernel(%arg0: i32, %arg1: memref<1x4x256xf32, #tpu.memory_space<vmem>>, %arg2: memref<19x256xbf16, #tpu.memory_space<vmem>>, %arg3: memref<32x19xbf16, #tpu.memory_space<vmem>>, %arg4: memref<8x36xbf16, #tpu.memory_space<vmem>>, %arg5: memref<8x72xbf16, #tpu.memory_space<vmem>>, %arg6: memref<4x36xbf16, #tpu.memory_space<vmem>>, %arg7: memref<8x36xbf16, #tpu.memory_space<vmem>>, %arg8: memref<4x36xbf16, #tpu.memory_space<vmem>>, %arg9: memref<4x1xf32, #tpu.memory_space<vmem>>, %arg10: memref<4x1xf32, #tpu.memory_space<vmem>>, %arg11: memref<4x1xf32, #tpu.memory_space<vmem>>, %arg12: memref<4x1xf32, #tpu.memory_space<vmem>>, %arg13: memref<4x4xf32, #tpu.memory_space<vmem>>, %arg14: memref<4x1xf32, #tpu.memory_space<vmem>>, %arg15: memref<4x1xf32, #tpu.memory_space<vmem>>, %arg16: memref<4x1xf32, #tpu.memory_space<vmem>>, %arg17: memref<1x4x256xf32, #tpu.memory_space<vmem>>) attributes {dimension_semantics = [#tpu.dimension_semantics<parallel>], iteration_bounds = array<i64: 2>, scalar_prefetch = 0 : i64, scratch_operands = 0 : i64, tpu.core_type = #tpu.core_type<tc>, window_params = [{transform_indices = @transform_0, window_bounds = array<i64: 1, 4, 256>}, {pipeline_mode = #tpu.pipeline_mode<synchronous>, transform_indices = @transform_1, window_bounds = array<i64: 19, 256>}, {pipeline_mode = #tpu.pipeline_mode<synchronous>, transform_indices = @transform_2, window_bounds = array<i64: 32, 19>}, {pipeline_mode = #tpu.pipeline_mode<synchronous>, transform_indices = @transform_3, window_bounds = array<i64: 8, 36>}, {pipeline_mode = #tpu.pipeline_mode<synchronous>, transform_indices = @transform_4, window_bounds = array<i64: 8, 72>}, {pipeline_mode = #tpu.pipeline_mode<synchronous>, transform_indices = @transform_5, window_bounds = array<i64: 4, 36>}, {pipeline_mode = #tpu.pipeline_mode<synchronous>, transform_indices = @transform_6, window_bounds = array<i64: 8, 36>}, {pipeline_mode = #tpu.pipeline_mode<synchronous>, transform_indices = @transform_7, window_bounds = array<i64: 4, 36>}, {pipeline_mode = #tpu.pipeline_mode<synchronous>, transform_indices = @transform_8, window_bounds = array<i64: 4, 1>}, {pipeline_mode = #tpu.pipeline_mode<synchronous>, transform_indices = @transform_9, window_bounds = array<i64: 4, 1>}, {pipeline_mode = #tpu.pipeline_mode<synchronous>, transform_indices = @transform_10, window_bounds = array<i64: 4, 1>}, {pipeline_mode = #tpu.pipeline_mode<synchronous>, transform_indices = @transform_11, window_bounds = array<i64: 4, 1>}, {pipeline_mode = #tpu.pipeline_mode<synchronous>, transform_indices = @transform_12, window_bounds = array<i64: 4, 4>}, {pipeline_mode = #tpu.pipeline_mode<synchronous>, transform_indices = @transform_13, window_bounds = array<i64: 4, 1>}, {pipeline_mode = #tpu.pipeline_mode<synchronous>, transform_indices = @transform_14, window_bounds = array<i64: 4, 1>}, {pipeline_mode = #tpu.pipeline_mode<synchronous>, transform_indices = @transform_15, window_bounds = array<i64: 4, 1>}, {transform_indices = @transform_16, window_bounds = array<i64: 1, 4, 256>}]} {
    %c0 = arith.constant 0 : index
    %c0_0 = arith.constant 0 : index
    %c0_1 = arith.constant 0 : index
    %0 = vector.load %arg1[%c0, %c0_0, %c0_1] : memref<1x4x256xf32, #tpu.memory_space<vmem>>, vector<1x4x256xf32>
    %1 = vector.shape_cast %0 : vector<1x4x256xf32> to vector<4x256xf32>
    %2 = tpu.iota {dimensions = array<i32: 1>} : vector<1x256xi32>
    %c15_i32 = arith.constant 15 : i32
    %3 = vector.broadcast %c15_i32 : i32 to vector<1x256xi32>
    %4 = arith.andi %2, %3 : vector<1x256xi32>
    %c-17_i32 = arith.constant -17 : i32
    %5 = vector.broadcast %c-17_i32 : i32 to vector<1x256xi32>
    %6 = arith.addi %2, %5 : vector<1x256xi32>
    %c0_i32 = arith.constant 0 : i32
    %7 = vector.broadcast %c0_i32 : i32 to vector<1x256xi32>
    %8 = arith.cmpi sge, %6, %7 : vector<1x256xi32>
    %c-17_i32_2 = arith.constant -17 : i32
    %9 = vector.broadcast %c-17_i32_2 : i32 to vector<1x256xi32>
    %10 = arith.addi %2, %9 : vector<1x256xi32>
    %c256_i32 = arith.constant 256 : i32
    %11 = vector.broadcast %c256_i32 : i32 to vector<1x256xi32>
    %12 = arith.cmpi slt, %10, %11 : vector<1x256xi32>
    %13 = arith.andi %8, %12 : vector<1x256xi1>
    %c1_i32 = arith.constant 1 : i32
    %14 = vector.broadcast %c1_i32 : i32 to vector<1x256xi32>
    %15 = arith.cmpi sge, %4, %14 : vector<1x256xi32>
    %16 = arith.andi %13, %15 : vector<1x256xi1>
    %17 = arith.extui %16 : vector<1x256xi1> to vector<1x256xi32>
    %18 = arith.sitofp %17 : vector<1x256xi32> to vector<1x256xf32>
    %c-16_i32 = arith.constant -16 : i32
    %19 = vector.broadcast %c-16_i32 : i32 to vector<1x256xi32>
    %20 = arith.addi %2, %19 : vector<1x256xi32>
    %c0_i32_3 = arith.constant 0 : i32
    %21 = vector.broadcast %c0_i32_3 : i32 to vector<1x256xi32>
    %22 = arith.cmpi sge, %20, %21 : vector<1x256xi32>
    %c-16_i32_4 = arith.constant -16 : i32
    %23 = vector.broadcast %c-16_i32_4 : i32 to vector<1x256xi32>
    %24 = arith.addi %2, %23 : vector<1x256xi32>
    %c256_i32_5 = arith.constant 256 : i32
    %25 = vector.broadcast %c256_i32_5 : i32 to vector<1x256xi32>
    %26 = arith.cmpi slt, %24, %25 : vector<1x256xi32>
    %27 = arith.andi %22, %26 : vector<1x256xi1>
    %28 = arith.extui %27 : vector<1x256xi1> to vector<1x256xi32>
    %29 = arith.sitofp %28 : vector<1x256xi32> to vector<1x256xf32>
    %c-15_i32 = arith.constant -15 : i32
    %30 = vector.broadcast %c-15_i32 : i32 to vector<1x256xi32>
    %31 = arith.addi %2, %30 : vector<1x256xi32>
    %c0_i32_6 = arith.constant 0 : i32
    %32 = vector.broadcast %c0_i32_6 : i32 to vector<1x256xi32>
    %33 = arith.cmpi sge, %31, %32 : vector<1x256xi32>
    %c-15_i32_7 = arith.constant -15 : i32
    %34 = vector.broadcast %c-15_i32_7 : i32 to vector<1x256xi32>
    %35 = arith.addi %2, %34 : vector<1x256xi32>
    %c256_i32_8 = arith.constant 256 : i32
    %36 = vector.broadcast %c256_i32_8 : i32 to vector<1x256xi32>
    %37 = arith.cmpi slt, %35, %36 : vector<1x256xi32>
    %38 = arith.andi %33, %37 : vector<1x256xi1>
    %c14_i32 = arith.constant 14 : i32
    %39 = vector.broadcast %c14_i32 : i32 to vector<1x256xi32>
    %40 = arith.cmpi sle, %4, %39 : vector<1x256xi32>
    %41 = arith.andi %38, %40 : vector<1x256xi1>
    %42 = arith.extui %41 : vector<1x256xi1> to vector<1x256xi32>
    %43 = arith.sitofp %42 : vector<1x256xi32> to vector<1x256xf32>
    %c-1_i32 = arith.constant -1 : i32
    %44 = vector.broadcast %c-1_i32 : i32 to vector<1x256xi32>
    %45 = arith.addi %2, %44 : vector<1x256xi32>
    %c0_i32_9 = arith.constant 0 : i32
    %46 = vector.broadcast %c0_i32_9 : i32 to vector<1x256xi32>
    %47 = arith.cmpi sge, %45, %46 : vector<1x256xi32>
    %c-1_i32_10 = arith.constant -1 : i32
    %48 = vector.broadcast %c-1_i32_10 : i32 to vector<1x256xi32>
    %49 = arith.addi %2, %48 : vector<1x256xi32>
    %c256_i32_11 = arith.constant 256 : i32
    %50 = vector.broadcast %c256_i32_11 : i32 to vector<1x256xi32>
    %51 = arith.cmpi slt, %49, %50 : vector<1x256xi32>
    %52 = arith.andi %47, %51 : vector<1x256xi1>
    %c1_i32_12 = arith.constant 1 : i32
    %53 = vector.broadcast %c1_i32_12 : i32 to vector<1x256xi32>
    %54 = arith.cmpi sge, %4, %53 : vector<1x256xi32>
    %55 = arith.andi %52, %54 : vector<1x256xi1>
    %56 = arith.extui %55 : vector<1x256xi1> to vector<1x256xi32>
    %57 = arith.sitofp %56 : vector<1x256xi32> to vector<1x256xf32>
    %c1_i32_13 = arith.constant 1 : i32
    %58 = vector.broadcast %c1_i32_13 : i32 to vector<1x256xi32>
    %59 = arith.addi %2, %58 : vector<1x256xi32>
    %c0_i32_14 = arith.constant 0 : i32
    %60 = vector.broadcast %c0_i32_14 : i32 to vector<1x256xi32>
    %61 = arith.cmpi sge, %59, %60 : vector<1x256xi32>
    %c1_i32_15 = arith.constant 1 : i32
    %62 = vector.broadcast %c1_i32_15 : i32 to vector<1x256xi32>
    %63 = arith.addi %2, %62 : vector<1x256xi32>
    %c256_i32_16 = arith.constant 256 : i32
    %64 = vector.broadcast %c256_i32_16 : i32 to vector<1x256xi32>
    %65 = arith.cmpi slt, %63, %64 : vector<1x256xi32>
    %66 = arith.andi %61, %65 : vector<1x256xi1>
    %c14_i32_17 = arith.constant 14 : i32
    %67 = vector.broadcast %c14_i32_17 : i32 to vector<1x256xi32>
    %68 = arith.cmpi sle, %4, %67 : vector<1x256xi32>
    %69 = arith.andi %66, %68 : vector<1x256xi1>
    %70 = arith.extui %69 : vector<1x256xi1> to vector<1x256xi32>
    %71 = arith.sitofp %70 : vector<1x256xi32> to vector<1x256xf32>
    %c15_i32_18 = arith.constant 15 : i32
    %72 = vector.broadcast %c15_i32_18 : i32 to vector<1x256xi32>
    %73 = arith.addi %2, %72 : vector<1x256xi32>
    %c0_i32_19 = arith.constant 0 : i32
    %74 = vector.broadcast %c0_i32_19 : i32 to vector<1x256xi32>
    %75 = arith.cmpi sge, %73, %74 : vector<1x256xi32>
    %c15_i32_20 = arith.constant 15 : i32
    %76 = vector.broadcast %c15_i32_20 : i32 to vector<1x256xi32>
    %77 = arith.addi %2, %76 : vector<1x256xi32>
    %c256_i32_21 = arith.constant 256 : i32
    %78 = vector.broadcast %c256_i32_21 : i32 to vector<1x256xi32>
    %79 = arith.cmpi slt, %77, %78 : vector<1x256xi32>
    %80 = arith.andi %75, %79 : vector<1x256xi1>
    %c1_i32_22 = arith.constant 1 : i32
    %81 = vector.broadcast %c1_i32_22 : i32 to vector<1x256xi32>
    %82 = arith.cmpi sge, %4, %81 : vector<1x256xi32>
    %83 = arith.andi %80, %82 : vector<1x256xi1>
    %84 = arith.extui %83 : vector<1x256xi1> to vector<1x256xi32>
    %85 = arith.sitofp %84 : vector<1x256xi32> to vector<1x256xf32>
    %c16_i32 = arith.constant 16 : i32
    %86 = vector.broadcast %c16_i32 : i32 to vector<1x256xi32>
    %87 = arith.addi %2, %86 : vector<1x256xi32>
    %c0_i32_23 = arith.constant 0 : i32
    %88 = vector.broadcast %c0_i32_23 : i32 to vector<1x256xi32>
    %89 = arith.cmpi sge, %87, %88 : vector<1x256xi32>
    %c16_i32_24 = arith.constant 16 : i32
    %90 = vector.broadcast %c16_i32_24 : i32 to vector<1x256xi32>
    %91 = arith.addi %2, %90 : vector<1x256xi32>
    %c256_i32_25 = arith.constant 256 : i32
    %92 = vector.broadcast %c256_i32_25 : i32 to vector<1x256xi32>
    %93 = arith.cmpi slt, %91, %92 : vector<1x256xi32>
    %94 = arith.andi %89, %93 : vector<1x256xi1>
    %95 = arith.extui %94 : vector<1x256xi1> to vector<1x256xi32>
    %96 = arith.sitofp %95 : vector<1x256xi32> to vector<1x256xf32>
    %c17_i32 = arith.constant 17 : i32
    %97 = vector.broadcast %c17_i32 : i32 to vector<1x256xi32>
    %98 = arith.addi %2, %97 : vector<1x256xi32>
    %c0_i32_26 = arith.constant 0 : i32
    %99 = vector.broadcast %c0_i32_26 : i32 to vector<1x256xi32>
    %100 = arith.cmpi sge, %98, %99 : vector<1x256xi32>
    %c17_i32_27 = arith.constant 17 : i32
    %101 = vector.broadcast %c17_i32_27 : i32 to vector<1x256xi32>
    %102 = arith.addi %2, %101 : vector<1x256xi32>
    %c256_i32_28 = arith.constant 256 : i32
    %103 = vector.broadcast %c256_i32_28 : i32 to vector<1x256xi32>
    %104 = arith.cmpi slt, %102, %103 : vector<1x256xi32>
    %105 = arith.andi %100, %104 : vector<1x256xi1>
    %c14_i32_29 = arith.constant 14 : i32
    %106 = vector.broadcast %c14_i32_29 : i32 to vector<1x256xi32>
    %107 = arith.cmpi sle, %4, %106 : vector<1x256xi32>
    %108 = arith.andi %105, %107 : vector<1x256xi1>
    %109 = arith.extui %108 : vector<1x256xi1> to vector<1x256xi32>
    %110 = arith.sitofp %109 : vector<1x256xi32> to vector<1x256xf32>
    %c0_30 = arith.constant 0 : index
    %c0_31 = arith.constant 0 : index
    %111 = vector.load %arg3[%c0_30, %c0_31] : memref<32x19xbf16, #tpu.memory_space<vmem>>, vector<32x19xbf16>
    %c0_32 = arith.constant 0 : index
    %c0_33 = arith.constant 0 : index
    %112 = vector.load %arg2[%c0_32, %c0_33] : memref<19x256xbf16, #tpu.memory_space<vmem>>, vector<19x256xbf16>
    %cst = arith.constant dense<0.000000e+00> : vector<32x256xf32>
    %113 = tpu.matmul %111, %112, %cst {dimension_numbers = #tpu.dot_dimension_numbers<[1], [0], [0], [1], [0, 0, 1, 1], [], []>} : vector<32x19xbf16>, vector<19x256xbf16>, vector<32x256xf32> -> vector<32x256xf32>
    %c0_34 = arith.constant 0 : index
    %c0_35 = arith.constant 0 : index
    %114 = vector.load %arg9[%c0_34, %c0_35] : memref<4x1xf32, #tpu.memory_space<vmem>>, vector<4x1xf32>
    %c0_36 = arith.constant 0 : index
    %c0_37 = arith.constant 0 : index
    %115 = vector.load %arg10[%c0_36, %c0_37] : memref<4x1xf32, #tpu.memory_space<vmem>>, vector<4x1xf32>
    %cst_38 = arith.constant dense<0.000000e+00> : vector<256xf32>
    %116 = vector.multi_reduction <add>, %1, %cst_38 [0] : vector<4x256xf32> to vector<256xf32>
    %117 = vector.shape_cast %116 : vector<256xf32> to vector<1x256xf32>
    %cst_39 = arith.constant 4.000000e+00 : f32
    %118 = vector.broadcast %cst_39 : f32 to vector<1x256xf32>
    %119 = arith.divf %117, %118 : vector<1x256xf32>
    %120 = vector.broadcast %119 : vector<1x256xf32> to vector<4x256xf32>
    %121 = arith.subf %1, %120 : vector<4x256xf32>
    %122 = arith.mulf %121, %121 : vector<4x256xf32>
    %cst_40 = arith.constant dense<0.000000e+00> : vector<256xf32>
    %123 = vector.multi_reduction <add>, %122, %cst_40 [0] : vector<4x256xf32> to vector<256xf32>
    %124 = vector.shape_cast %123 : vector<256xf32> to vector<1x256xf32>
    %cst_41 = arith.constant 4.000000e+00 : f32
    %125 = vector.broadcast %cst_41 : f32 to vector<1x256xf32>
    %126 = arith.divf %124, %125 : vector<1x256xf32>
    %127 = vector.broadcast %119 : vector<1x256xf32> to vector<4x256xf32>
    %128 = arith.subf %1, %127 : vector<4x256xf32>
    %cst_42 = arith.constant 9.99999997E-7 : f32
    %129 = vector.broadcast %cst_42 : f32 to vector<1x256xf32>
    %130 = arith.addf %126, %129 : vector<1x256xf32>
    %131 = math.rsqrt %130 : vector<1x256xf32>
    %132 = vector.broadcast %131 : vector<1x256xf32> to vector<4x256xf32>
    %133 = arith.mulf %128, %132 : vector<4x256xf32>
    %134 = vector.broadcast %114 : vector<4x1xf32> to vector<4x256xf32>
    %135 = arith.mulf %134, %133 : vector<4x256xf32>
    %136 = vector.broadcast %115 : vector<4x1xf32> to vector<4x256xf32>
    %137 = arith.addf %135, %136 : vector<4x256xf32>
    %138 = vector.extract_strided_slice %113 {offsets = [0, 0], sizes = [8, 256], strides = [1, 1]} : vector<32x256xf32> to vector<8x256xf32>
    %c17_i32_43 = arith.constant 17 : i32
    %139 = tpu.dynamic_rotate %137 by %c17_i32_43 dim 1 : vector<4x256xf32>, i32 -> vector<4x256xf32>
    %140 = vector.broadcast %18 : vector<1x256xf32> to vector<4x256xf32>
    %141 = arith.mulf %139, %140 : vector<4x256xf32>
    %c16_i32_44 = arith.constant 16 : i32
    %142 = tpu.dynamic_rotate %137 by %c16_i32_44 dim 1 : vector<4x256xf32>, i32 -> vector<4x256xf32>
    %143 = vector.broadcast %29 : vector<1x256xf32> to vector<4x256xf32>
    %144 = arith.mulf %142, %143 : vector<4x256xf32>
    %c15_i32_45 = arith.constant 15 : i32
    %145 = tpu.dynamic_rotate %137 by %c15_i32_45 dim 1 : vector<4x256xf32>, i32 -> vector<4x256xf32>
    %146 = vector.broadcast %43 : vector<1x256xf32> to vector<4x256xf32>
    %147 = arith.mulf %145, %146 : vector<4x256xf32>
    %c1_i32_46 = arith.constant 1 : i32
    %148 = tpu.dynamic_rotate %137 by %c1_i32_46 dim 1 : vector<4x256xf32>, i32 -> vector<4x256xf32>
    %149 = vector.broadcast %57 : vector<1x256xf32> to vector<4x256xf32>
    %150 = arith.mulf %148, %149 : vector<4x256xf32>
    %c255_i32 = arith.constant 255 : i32
    %151 = tpu.dynamic_rotate %137 by %c255_i32 dim 1 : vector<4x256xf32>, i32 -> vector<4x256xf32>
    %152 = vector.broadcast %71 : vector<1x256xf32> to vector<4x256xf32>
    %153 = arith.mulf %151, %152 : vector<4x256xf32>
    %c241_i32 = arith.constant 241 : i32
    %154 = tpu.dynamic_rotate %137 by %c241_i32 dim 1 : vector<4x256xf32>, i32 -> vector<4x256xf32>
    %155 = vector.broadcast %85 : vector<1x256xf32> to vector<4x256xf32>
    %156 = arith.mulf %154, %155 : vector<4x256xf32>
    %c240_i32 = arith.constant 240 : i32
    %157 = tpu.dynamic_rotate %137 by %c240_i32 dim 1 : vector<4x256xf32>, i32 -> vector<4x256xf32>
    %158 = vector.broadcast %96 : vector<1x256xf32> to vector<4x256xf32>
    %159 = arith.mulf %157, %158 : vector<4x256xf32>
    %c239_i32 = arith.constant 239 : i32
    %160 = tpu.dynamic_rotate %137 by %c239_i32 dim 1 : vector<4x256xf32>, i32 -> vector<4x256xf32>
    %161 = vector.broadcast %110 : vector<1x256xf32> to vector<4x256xf32>
    %162 = arith.mulf %160, %161 : vector<4x256xf32>
    %163 = tpu.concatenate %141, %144, %147, %150, %137, %153, %156, %159, %162 in 0 : vector<4x256xf32>, vector<4x256xf32>, vector<4x256xf32>, vector<4x256xf32>, vector<4x256xf32>, vector<4x256xf32>, vector<4x256xf32>, vector<4x256xf32>, vector<4x256xf32> -> vector<36x256xf32>
    %164 = arith.truncf %163 : vector<36x256xf32> to vector<36x256xbf16>
    %c0_47 = arith.constant 0 : index
    %c0_48 = arith.constant 0 : index
    %165 = vector.load %arg4[%c0_47, %c0_48] : memref<8x36xbf16, #tpu.memory_space<vmem>>, vector<8x36xbf16>
    %cst_49 = arith.constant dense<0.000000e+00> : vector<8x256xf32>
    %166 = tpu.matmul %165, %164, %cst_49 {dimension_numbers = #tpu.dot_dimension_numbers<[1], [0], [0], [1], [0, 0, 1, 1], [], []>} : vector<8x36xbf16>, vector<36x256xbf16>, vector<8x256xf32> -> vector<8x256xf32>
    %167 = arith.addf %166, %138 : vector<8x256xf32>
    %168 = vector.extract_strided_slice %113 {offsets = [8, 0], sizes = [8, 256], strides = [1, 1]} : vector<32x256xf32> to vector<8x256xf32>
    %c17_i32_50 = arith.constant 17 : i32
    %169 = tpu.dynamic_rotate %167 by %c17_i32_50 dim 1 : vector<8x256xf32>, i32 -> vector<8x256xf32>
    %170 = vector.broadcast %18 : vector<1x256xf32> to vector<8x256xf32>
    %171 = arith.mulf %169, %170 : vector<8x256xf32>
    %c16_i32_51 = arith.constant 16 : i32
    %172 = tpu.dynamic_rotate %167 by %c16_i32_51 dim 1 : vector<8x256xf32>, i32 -> vector<8x256xf32>
    %173 = vector.broadcast %29 : vector<1x256xf32> to vector<8x256xf32>
    %174 = arith.mulf %172, %173 : vector<8x256xf32>
    %c15_i32_52 = arith.constant 15 : i32
    %175 = tpu.dynamic_rotate %167 by %c15_i32_52 dim 1 : vector<8x256xf32>, i32 -> vector<8x256xf32>
    %176 = vector.broadcast %43 : vector<1x256xf32> to vector<8x256xf32>
    %177 = arith.mulf %175, %176 : vector<8x256xf32>
    %c1_i32_53 = arith.constant 1 : i32
    %178 = tpu.dynamic_rotate %167 by %c1_i32_53 dim 1 : vector<8x256xf32>, i32 -> vector<8x256xf32>
    %179 = vector.broadcast %57 : vector<1x256xf32> to vector<8x256xf32>
    %180 = arith.mulf %178, %179 : vector<8x256xf32>
    %c255_i32_54 = arith.constant 255 : i32
    %181 = tpu.dynamic_rotate %167 by %c255_i32_54 dim 1 : vector<8x256xf32>, i32 -> vector<8x256xf32>
    %182 = vector.broadcast %71 : vector<1x256xf32> to vector<8x256xf32>
    %183 = arith.mulf %181, %182 : vector<8x256xf32>
    %c241_i32_55 = arith.constant 241 : i32
    %184 = tpu.dynamic_rotate %167 by %c241_i32_55 dim 1 : vector<8x256xf32>, i32 -> vector<8x256xf32>
    %185 = vector.broadcast %85 : vector<1x256xf32> to vector<8x256xf32>
    %186 = arith.mulf %184, %185 : vector<8x256xf32>
    %c240_i32_56 = arith.constant 240 : i32
    %187 = tpu.dynamic_rotate %167 by %c240_i32_56 dim 1 : vector<8x256xf32>, i32 -> vector<8x256xf32>
    %188 = vector.broadcast %96 : vector<1x256xf32> to vector<8x256xf32>
    %189 = arith.mulf %187, %188 : vector<8x256xf32>
    %c239_i32_57 = arith.constant 239 : i32
    %190 = tpu.dynamic_rotate %167 by %c239_i32_57 dim 1 : vector<8x256xf32>, i32 -> vector<8x256xf32>
    %191 = vector.broadcast %110 : vector<1x256xf32> to vector<8x256xf32>
    %192 = arith.mulf %190, %191 : vector<8x256xf32>
    %193 = tpu.concatenate %171, %174, %177, %180, %167, %183, %186, %189, %192 in 0 : vector<8x256xf32>, vector<8x256xf32>, vector<8x256xf32>, vector<8x256xf32>, vector<8x256xf32>, vector<8x256xf32>, vector<8x256xf32>, vector<8x256xf32>, vector<8x256xf32> -> vector<72x256xf32>
    %194 = arith.truncf %193 : vector<72x256xf32> to vector<72x256xbf16>
    %c0_58 = arith.constant 0 : index
    %c0_59 = arith.constant 0 : index
    %195 = vector.load %arg5[%c0_58, %c0_59] : memref<8x72xbf16, #tpu.memory_space<vmem>>, vector<8x72xbf16>
    %cst_60 = arith.constant dense<0.000000e+00> : vector<8x256xf32>
    %196 = tpu.matmul %195, %194, %cst_60 {dimension_numbers = #tpu.dot_dimension_numbers<[1], [0], [0], [1], [0, 0, 1, 1], [], []>} : vector<8x72xbf16>, vector<72x256xbf16>, vector<8x256xf32> -> vector<8x256xf32>
    %197 = arith.addf %196, %168 : vector<8x256xf32>
    %198 = vector.extract_strided_slice %197 {offsets = [0, 0], sizes = [4, 256], strides = [1, 1]} : vector<8x256xf32> to vector<4x256xf32>
    %199 = vector.extract_strided_slice %197 {offsets = [4, 0], sizes = [4, 256], strides = [1, 1]} : vector<8x256xf32> to vector<4x256xf32>
    %200 = arith.mulf %198, %199 : vector<4x256xf32>
    %cst_61 = arith.constant dense<0.000000e+00> : vector<4xf32>
    %201 = vector.multi_reduction <add>, %200, %cst_61 [1] : vector<4x256xf32> to vector<4xf32>
    %202 = vector.shape_cast %201 : vector<4xf32> to vector<4x1xf32>
    %cst_62 = arith.constant 2.560000e+02 : f32
    %203 = vector.broadcast %cst_62 : f32 to vector<4x1xf32>
    %204 = arith.divf %202, %203 : vector<4x1xf32>
    %c0_63 = arith.constant 0 : index
    %c0_64 = arith.constant 0 : index
    %205 = vector.load %arg13[%c0_63, %c0_64] : memref<4x4xf32, #tpu.memory_space<vmem>>, vector<4x4xf32>
    %cst_65 = arith.constant dense<0.000000e+00> : vector<4x1xf32>
    %206 = tpu.matmul %205, %204, %cst_65 {dimension_numbers = #tpu.dot_dimension_numbers<[1], [0], [0], [1], [0, 0, 1, 1], [], []>} : vector<4x4xf32>, vector<4x1xf32>, vector<4x1xf32> -> vector<4x1xf32>
    %c0_66 = arith.constant 0 : index
    %c0_67 = arith.constant 0 : index
    %207 = vector.load %arg14[%c0_66, %c0_67] : memref<4x1xf32, #tpu.memory_space<vmem>>, vector<4x1xf32>
    %208 = arith.addf %206, %207 : vector<4x1xf32>
    %209 = vector.broadcast %208 : vector<4x1xf32> to vector<4x256xf32>
    %210 = arith.mulf %200, %209 : vector<4x256xf32>
    %211 = vector.extract_strided_slice %113 {offsets = [16, 0], sizes = [4, 256], strides = [1, 1]} : vector<32x256xf32> to vector<4x256xf32>
    %c17_i32_68 = arith.constant 17 : i32
    %212 = tpu.dynamic_rotate %210 by %c17_i32_68 dim 1 : vector<4x256xf32>, i32 -> vector<4x256xf32>
    %213 = vector.broadcast %18 : vector<1x256xf32> to vector<4x256xf32>
    %214 = arith.mulf %212, %213 : vector<4x256xf32>
    %c16_i32_69 = arith.constant 16 : i32
    %215 = tpu.dynamic_rotate %210 by %c16_i32_69 dim 1 : vector<4x256xf32>, i32 -> vector<4x256xf32>
    %216 = vector.broadcast %29 : vector<1x256xf32> to vector<4x256xf32>
    %217 = arith.mulf %215, %216 : vector<4x256xf32>
    %c15_i32_70 = arith.constant 15 : i32
    %218 = tpu.dynamic_rotate %210 by %c15_i32_70 dim 1 : vector<4x256xf32>, i32 -> vector<4x256xf32>
    %219 = vector.broadcast %43 : vector<1x256xf32> to vector<4x256xf32>
    %220 = arith.mulf %218, %219 : vector<4x256xf32>
    %c1_i32_71 = arith.constant 1 : i32
    %221 = tpu.dynamic_rotate %210 by %c1_i32_71 dim 1 : vector<4x256xf32>, i32 -> vector<4x256xf32>
    %222 = vector.broadcast %57 : vector<1x256xf32> to vector<4x256xf32>
    %223 = arith.mulf %221, %222 : vector<4x256xf32>
    %c255_i32_72 = arith.constant 255 : i32
    %224 = tpu.dynamic_rotate %210 by %c255_i32_72 dim 1 : vector<4x256xf32>, i32 -> vector<4x256xf32>
    %225 = vector.broadcast %71 : vector<1x256xf32> to vector<4x256xf32>
    %226 = arith.mulf %224, %225 : vector<4x256xf32>
    %c241_i32_73 = arith.constant 241 : i32
    %227 = tpu.dynamic_rotate %210 by %c241_i32_73 dim 1 : vector<4x256xf32>, i32 -> vector<4x256xf32>
    %228 = vector.broadcast %85 : vector<1x256xf32> to vector<4x256xf32>
    %229 = arith.mulf %227, %228 : vector<4x256xf32>
    %c240_i32_74 = arith.constant 240 : i32
    %230 = tpu.dynamic_rotate %210 by %c240_i32_74 dim 1 : vector<4x256xf32>, i32 -> vector<4x256xf32>
    %231 = vector.broadcast %96 : vector<1x256xf32> to vector<4x256xf32>
    %232 = arith.mulf %230, %231 : vector<4x256xf32>
    %c239_i32_75 = arith.constant 239 : i32
    %233 = tpu.dynamic_rotate %210 by %c239_i32_75 dim 1 : vector<4x256xf32>, i32 -> vector<4x256xf32>
    %234 = vector.broadcast %110 : vector<1x256xf32> to vector<4x256xf32>
    %235 = arith.mulf %233, %234 : vector<4x256xf32>
    %236 = tpu.concatenate %214, %217, %220, %223, %210, %226, %229, %232, %235 in 0 : vector<4x256xf32>, vector<4x256xf32>, vector<4x256xf32>, vector<4x256xf32>, vector<4x256xf32>, vector<4x256xf32>, vector<4x256xf32>, vector<4x256xf32>, vector<4x256xf32> -> vector<36x256xf32>
    %237 = arith.truncf %236 : vector<36x256xf32> to vector<36x256xbf16>
    %c0_76 = arith.constant 0 : index
    %c0_77 = arith.constant 0 : index
    %238 = vector.load %arg6[%c0_76, %c0_77] : memref<4x36xbf16, #tpu.memory_space<vmem>>, vector<4x36xbf16>
    %cst_78 = arith.constant dense<0.000000e+00> : vector<4x256xf32>
    %239 = tpu.matmul %238, %237, %cst_78 {dimension_numbers = #tpu.dot_dimension_numbers<[1], [0], [0], [1], [0, 0, 1, 1], [], []>} : vector<4x36xbf16>, vector<36x256xbf16>, vector<4x256xf32> -> vector<4x256xf32>
    %240 = arith.addf %239, %211 : vector<4x256xf32>
    %c0_79 = arith.constant 0 : index
    %c0_80 = arith.constant 0 : index
    %241 = vector.load %arg15[%c0_79, %c0_80] : memref<4x1xf32, #tpu.memory_space<vmem>>, vector<4x1xf32>
    %242 = vector.broadcast %241 : vector<4x1xf32> to vector<4x256xf32>
    %243 = arith.mulf %240, %242 : vector<4x256xf32>
    %244 = arith.addf %1, %243 : vector<4x256xf32>
    %c0_81 = arith.constant 0 : index
    %c0_82 = arith.constant 0 : index
    %245 = vector.load %arg11[%c0_81, %c0_82] : memref<4x1xf32, #tpu.memory_space<vmem>>, vector<4x1xf32>
    %c0_83 = arith.constant 0 : index
    %c0_84 = arith.constant 0 : index
    %246 = vector.load %arg12[%c0_83, %c0_84] : memref<4x1xf32, #tpu.memory_space<vmem>>, vector<4x1xf32>
    %cst_85 = arith.constant dense<0.000000e+00> : vector<256xf32>
    %247 = vector.multi_reduction <add>, %244, %cst_85 [0] : vector<4x256xf32> to vector<256xf32>
    %248 = vector.shape_cast %247 : vector<256xf32> to vector<1x256xf32>
    %cst_86 = arith.constant 4.000000e+00 : f32
    %249 = vector.broadcast %cst_86 : f32 to vector<1x256xf32>
    %250 = arith.divf %248, %249 : vector<1x256xf32>
    %251 = vector.broadcast %250 : vector<1x256xf32> to vector<4x256xf32>
    %252 = arith.subf %244, %251 : vector<4x256xf32>
    %253 = arith.mulf %252, %252 : vector<4x256xf32>
    %cst_87 = arith.constant dense<0.000000e+00> : vector<256xf32>
    %254 = vector.multi_reduction <add>, %253, %cst_87 [0] : vector<4x256xf32> to vector<256xf32>
    %255 = vector.shape_cast %254 : vector<256xf32> to vector<1x256xf32>
    %cst_88 = arith.constant 4.000000e+00 : f32
    %256 = vector.broadcast %cst_88 : f32 to vector<1x256xf32>
    %257 = arith.divf %255, %256 : vector<1x256xf32>
    %258 = vector.broadcast %250 : vector<1x256xf32> to vector<4x256xf32>
    %259 = arith.subf %244, %258 : vector<4x256xf32>
    %cst_89 = arith.constant 9.99999997E-7 : f32
    %260 = vector.broadcast %cst_89 : f32 to vector<1x256xf32>
    %261 = arith.addf %257, %260 : vector<1x256xf32>
    %262 = math.rsqrt %261 : vector<1x256xf32>
    %263 = vector.broadcast %262 : vector<1x256xf32> to vector<4x256xf32>
    %264 = arith.mulf %259, %263 : vector<4x256xf32>
    %265 = vector.broadcast %245 : vector<4x1xf32> to vector<4x256xf32>
    %266 = arith.mulf %265, %264 : vector<4x256xf32>
    %267 = vector.broadcast %246 : vector<4x1xf32> to vector<4x256xf32>
    %268 = arith.addf %266, %267 : vector<4x256xf32>
    %269 = vector.extract_strided_slice %113 {offsets = [20, 0], sizes = [8, 256], strides = [1, 1]} : vector<32x256xf32> to vector<8x256xf32>
    %c17_i32_90 = arith.constant 17 : i32
    %270 = tpu.dynamic_rotate %268 by %c17_i32_90 dim 1 : vector<4x256xf32>, i32 -> vector<4x256xf32>
    %271 = vector.broadcast %18 : vector<1x256xf32> to vector<4x256xf32>
    %272 = arith.mulf %270, %271 : vector<4x256xf32>
    %c16_i32_91 = arith.constant 16 : i32
    %273 = tpu.dynamic_rotate %268 by %c16_i32_91 dim 1 : vector<4x256xf32>, i32 -> vector<4x256xf32>
    %274 = vector.broadcast %29 : vector<1x256xf32> to vector<4x256xf32>
    %275 = arith.mulf %273, %274 : vector<4x256xf32>
    %c15_i32_92 = arith.constant 15 : i32
    %276 = tpu.dynamic_rotate %268 by %c15_i32_92 dim 1 : vector<4x256xf32>, i32 -> vector<4x256xf32>
    %277 = vector.broadcast %43 : vector<1x256xf32> to vector<4x256xf32>
    %278 = arith.mulf %276, %277 : vector<4x256xf32>
    %c1_i32_93 = arith.constant 1 : i32
    %279 = tpu.dynamic_rotate %268 by %c1_i32_93 dim 1 : vector<4x256xf32>, i32 -> vector<4x256xf32>
    %280 = vector.broadcast %57 : vector<1x256xf32> to vector<4x256xf32>
    %281 = arith.mulf %279, %280 : vector<4x256xf32>
    %c255_i32_94 = arith.constant 255 : i32
    %282 = tpu.dynamic_rotate %268 by %c255_i32_94 dim 1 : vector<4x256xf32>, i32 -> vector<4x256xf32>
    %283 = vector.broadcast %71 : vector<1x256xf32> to vector<4x256xf32>
    %284 = arith.mulf %282, %283 : vector<4x256xf32>
    %c241_i32_95 = arith.constant 241 : i32
    %285 = tpu.dynamic_rotate %268 by %c241_i32_95 dim 1 : vector<4x256xf32>, i32 -> vector<4x256xf32>
    %286 = vector.broadcast %85 : vector<1x256xf32> to vector<4x256xf32>
    %287 = arith.mulf %285, %286 : vector<4x256xf32>
    %c240_i32_96 = arith.constant 240 : i32
    %288 = tpu.dynamic_rotate %268 by %c240_i32_96 dim 1 : vector<4x256xf32>, i32 -> vector<4x256xf32>
    %289 = vector.broadcast %96 : vector<1x256xf32> to vector<4x256xf32>
    %290 = arith.mulf %288, %289 : vector<4x256xf32>
    %c239_i32_97 = arith.constant 239 : i32
    %291 = tpu.dynamic_rotate %268 by %c239_i32_97 dim 1 : vector<4x256xf32>, i32 -> vector<4x256xf32>
    %292 = vector.broadcast %110 : vector<1x256xf32> to vector<4x256xf32>
    %293 = arith.mulf %291, %292 : vector<4x256xf32>
    %294 = tpu.concatenate %272, %275, %278, %281, %268, %284, %287, %290, %293 in 0 : vector<4x256xf32>, vector<4x256xf32>, vector<4x256xf32>, vector<4x256xf32>, vector<4x256xf32>, vector<4x256xf32>, vector<4x256xf32>, vector<4x256xf32>, vector<4x256xf32> -> vector<36x256xf32>
    %295 = arith.truncf %294 : vector<36x256xf32> to vector<36x256xbf16>
    %c0_98 = arith.constant 0 : index
    %c0_99 = arith.constant 0 : index
    %296 = vector.load %arg7[%c0_98, %c0_99] : memref<8x36xbf16, #tpu.memory_space<vmem>>, vector<8x36xbf16>
    %cst_100 = arith.constant dense<0.000000e+00> : vector<8x256xf32>
    %297 = tpu.matmul %296, %295, %cst_100 {dimension_numbers = #tpu.dot_dimension_numbers<[1], [0], [0], [1], [0, 0, 1, 1], [], []>} : vector<8x36xbf16>, vector<36x256xbf16>, vector<8x256xf32> -> vector<8x256xf32>
    %298 = arith.addf %297, %269 : vector<8x256xf32>
    %299 = vector.extract_strided_slice %298 {offsets = [0, 0], sizes = [4, 256], strides = [1, 1]} : vector<8x256xf32> to vector<4x256xf32>
    %300 = vector.extract_strided_slice %298 {offsets = [4, 0], sizes = [4, 256], strides = [1, 1]} : vector<8x256xf32> to vector<4x256xf32>
    %301 = arith.mulf %299, %300 : vector<4x256xf32>
    %302 = vector.extract_strided_slice %113 {offsets = [28, 0], sizes = [4, 256], strides = [1, 1]} : vector<32x256xf32> to vector<4x256xf32>
    %c17_i32_101 = arith.constant 17 : i32
    %303 = tpu.dynamic_rotate %301 by %c17_i32_101 dim 1 : vector<4x256xf32>, i32 -> vector<4x256xf32>
    %304 = vector.broadcast %18 : vector<1x256xf32> to vector<4x256xf32>
    %305 = arith.mulf %303, %304 : vector<4x256xf32>
    %c16_i32_102 = arith.constant 16 : i32
    %306 = tpu.dynamic_rotate %301 by %c16_i32_102 dim 1 : vector<4x256xf32>, i32 -> vector<4x256xf32>
    %307 = vector.broadcast %29 : vector<1x256xf32> to vector<4x256xf32>
    %308 = arith.mulf %306, %307 : vector<4x256xf32>
    %c15_i32_103 = arith.constant 15 : i32
    %309 = tpu.dynamic_rotate %301 by %c15_i32_103 dim 1 : vector<4x256xf32>, i32 -> vector<4x256xf32>
    %310 = vector.broadcast %43 : vector<1x256xf32> to vector<4x256xf32>
    %311 = arith.mulf %309, %310 : vector<4x256xf32>
    %c1_i32_104 = arith.constant 1 : i32
    %312 = tpu.dynamic_rotate %301 by %c1_i32_104 dim 1 : vector<4x256xf32>, i32 -> vector<4x256xf32>
    %313 = vector.broadcast %57 : vector<1x256xf32> to vector<4x256xf32>
    %314 = arith.mulf %312, %313 : vector<4x256xf32>
    %c255_i32_105 = arith.constant 255 : i32
    %315 = tpu.dynamic_rotate %301 by %c255_i32_105 dim 1 : vector<4x256xf32>, i32 -> vector<4x256xf32>
    %316 = vector.broadcast %71 : vector<1x256xf32> to vector<4x256xf32>
    %317 = arith.mulf %315, %316 : vector<4x256xf32>
    %c241_i32_106 = arith.constant 241 : i32
    %318 = tpu.dynamic_rotate %301 by %c241_i32_106 dim 1 : vector<4x256xf32>, i32 -> vector<4x256xf32>
    %319 = vector.broadcast %85 : vector<1x256xf32> to vector<4x256xf32>
    %320 = arith.mulf %318, %319 : vector<4x256xf32>
    %c240_i32_107 = arith.constant 240 : i32
    %321 = tpu.dynamic_rotate %301 by %c240_i32_107 dim 1 : vector<4x256xf32>, i32 -> vector<4x256xf32>
    %322 = vector.broadcast %96 : vector<1x256xf32> to vector<4x256xf32>
    %323 = arith.mulf %321, %322 : vector<4x256xf32>
    %c239_i32_108 = arith.constant 239 : i32
    %324 = tpu.dynamic_rotate %301 by %c239_i32_108 dim 1 : vector<4x256xf32>, i32 -> vector<4x256xf32>
    %325 = vector.broadcast %110 : vector<1x256xf32> to vector<4x256xf32>
    %326 = arith.mulf %324, %325 : vector<4x256xf32>
    %327 = tpu.concatenate %305, %308, %311, %314, %301, %317, %320, %323, %326 in 0 : vector<4x256xf32>, vector<4x256xf32>, vector<4x256xf32>, vector<4x256xf32>, vector<4x256xf32>, vector<4x256xf32>, vector<4x256xf32>, vector<4x256xf32>, vector<4x256xf32> -> vector<36x256xf32>
    %328 = arith.truncf %327 : vector<36x256xf32> to vector<36x256xbf16>
    %c0_109 = arith.constant 0 : index
    %c0_110 = arith.constant 0 : index
    %329 = vector.load %arg8[%c0_109, %c0_110] : memref<4x36xbf16, #tpu.memory_space<vmem>>, vector<4x36xbf16>
    %cst_111 = arith.constant dense<0.000000e+00> : vector<4x256xf32>
    %330 = tpu.matmul %329, %328, %cst_111 {dimension_numbers = #tpu.dot_dimension_numbers<[1], [0], [0], [1], [0, 0, 1, 1], [], []>} : vector<4x36xbf16>, vector<36x256xbf16>, vector<4x256xf32> -> vector<4x256xf32>
    %331 = arith.addf %330, %302 : vector<4x256xf32>
    %c0_112 = arith.constant 0 : index
    %c0_113 = arith.constant 0 : index
    %332 = vector.load %arg16[%c0_112, %c0_113] : memref<4x1xf32, #tpu.memory_space<vmem>>, vector<4x1xf32>
    %333 = vector.broadcast %332 : vector<4x1xf32> to vector<4x256xf32>
    %334 = arith.mulf %331, %333 : vector<4x256xf32>
    %335 = arith.addf %244, %334 : vector<4x256xf32>
    %c0_114 = arith.constant 0 : index
    %c0_115 = arith.constant 0 : index
    %c0_116 = arith.constant 0 : index
    %336 = vector.load %arg17[%c0_114, %c0_115, %c0_116] : memref<1x4x256xf32, #tpu.memory_space<vmem>>, vector<1x4x256xf32>
    %337 = vector.shape_cast %336 : vector<1x4x256xf32> to vector<4x256xf32>
    %338 = vector.shape_cast %335 : vector<4x256xf32> to vector<1x4x256xf32>
    tpu.vector_store %arg17[%c0_114, %c0_115, %c0_116], %338 {strides = array<i32>} : memref<1x4x256xf32, #tpu.memory_space<vmem>>, vector<1x4x256xf32>,
    return
  }
  func.func @transform_0(%arg0: i32) -> (i32, i32, i32) {
    %c0_i32 = arith.constant 0 : i32
    %c0_i32_0 = arith.constant 0 : i32
    %c0_i32_1 = arith.constant 0 : i32
    return %arg0, %c0_i32, %c0_i32_0 : i32, i32, i32
  }
  func.func @transform_1(%arg0: i32) -> (i32, i32) {
    %c0_i32 = arith.constant 0 : i32
    %c0_i32_0 = arith.constant 0 : i32
    %c0_i32_1 = arith.constant 0 : i32
    return %c0_i32, %c0_i32_0 : i32, i32
  }
  func.func @transform_2(%arg0: i32) -> (i32, i32) {
    %c0_i32 = arith.constant 0 : i32
    %c0_i32_0 = arith.constant 0 : i32
    %c0_i32_1 = arith.constant 0 : i32
    return %c0_i32, %c0_i32_0 : i32, i32
  }
  func.func @transform_3(%arg0: i32) -> (i32, i32) {
    %c0_i32 = arith.constant 0 : i32
    %c0_i32_0 = arith.constant 0 : i32
    %c0_i32_1 = arith.constant 0 : i32
    return %c0_i32, %c0_i32_0 : i32, i32
  }
  func.func @transform_4(%arg0: i32) -> (i32, i32) {
    %c0_i32 = arith.constant 0 : i32
    %c0_i32_0 = arith.constant 0 : i32
    %c0_i32_1 = arith.constant 0 : i32
    return %c0_i32, %c0_i32_0 : i32, i32
  }
  func.func @transform_5(%arg0: i32) -> (i32, i32) {
    %c0_i32 = arith.constant 0 : i32
    %c0_i32_0 = arith.constant 0 : i32
    %c0_i32_1 = arith.constant 0 : i32
    return %c0_i32, %c0_i32_0 : i32, i32
  }
  func.func @transform_6(%arg0: i32) -> (i32, i32) {
    %c0_i32 = arith.constant 0 : i32
    %c0_i32_0 = arith.constant 0 : i32
    %c0_i32_1 = arith.constant 0 : i32
    return %c0_i32, %c0_i32_0 : i32, i32
  }
  func.func @transform_7(%arg0: i32) -> (i32, i32) {
    %c0_i32 = arith.constant 0 : i32
    %c0_i32_0 = arith.constant 0 : i32
    %c0_i32_1 = arith.constant 0 : i32
    return %c0_i32, %c0_i32_0 : i32, i32
  }
  func.func @transform_8(%arg0: i32) -> (i32, i32) {
    %c0_i32 = arith.constant 0 : i32
    %c0_i32_0 = arith.constant 0 : i32
    %c0_i32_1 = arith.constant 0 : i32
    return %c0_i32, %c0_i32_0 : i32, i32
  }
  func.func @transform_9(%arg0: i32) -> (i32, i32) {
    %c0_i32 = arith.constant 0 : i32
    %c0_i32_0 = arith.constant 0 : i32
    %c0_i32_1 = arith.constant 0 : i32
    return %c0_i32, %c0_i32_0 : i32, i32
  }
  func.func @transform_10(%arg0: i32) -> (i32, i32) {
    %c0_i32 = arith.constant 0 : i32
    %c0_i32_0 = arith.constant 0 : i32
    %c0_i32_1 = arith.constant 0 : i32
    return %c0_i32, %c0_i32_0 : i32, i32
  }
  func.func @transform_11(%arg0: i32) -> (i32, i32) {
    %c0_i32 = arith.constant 0 : i32
    %c0_i32_0 = arith.constant 0 : i32
    %c0_i32_1 = arith.constant 0 : i32
    return %c0_i32, %c0_i32_0 : i32, i32
  }
  func.func @transform_12(%arg0: i32) -> (i32, i32) {
    %c0_i32 = arith.constant 0 : i32
    %c0_i32_0 = arith.constant 0 : i32
    %c0_i32_1 = arith.constant 0 : i32
    return %c0_i32, %c0_i32_0 : i32, i32
  }
  func.func @transform_13(%arg0: i32) -> (i32, i32) {
    %c0_i32 = arith.constant 0 : i32
    %c0_i32_0 = arith.constant 0 : i32
    %c0_i32_1 = arith.constant 0 : i32
    return %c0_i32, %c0_i32_0 : i32, i32
  }
  func.func @transform_14(%arg0: i32) -> (i32, i32) {
    %c0_i32 = arith.constant 0 : i32
    %c0_i32_0 = arith.constant 0 : i32
    %c0_i32_1 = arith.constant 0 : i32
    return %c0_i32, %c0_i32_0 : i32, i32
  }
  func.func @transform_15(%arg0: i32) -> (i32, i32) {
    %c0_i32 = arith.constant 0 : i32
    %c0_i32_0 = arith.constant 0 : i32
    %c0_i32_1 = arith.constant 0 : i32
    return %c0_i32, %c0_i32_0 : i32, i32
  }
  func.func @transform_16(%arg0: i32) -> (i32, i32, i32) {
    %c0_i32 = arith.constant 0 : i32
    %c0_i32_0 = arith.constant 0 : i32
    %c0_i32_1 = arith.constant 0 : i32
    return %arg0, %c0_i32, %c0_i32_0 : i32, i32, i32
  }
}

</mosaic_0001>

<llo_original>
// kernel: tpu_custom_call.1
$region0: #{tpu_custom_call.1}
  #allocation0 [shape = 'u32[]', space=smem, size = 0x4, offset = 0x4, fixed_abs, tag = 'smem constant byte address 0x4 - core index']
  #allocation1 [shape = 'u32[144,128]{1,0:T(1,128)}', space=vmem, size = 0x12000, scoped, tag = 'internal scratch']
  %s0 = inlined_call_operand.vmem [shape: f32[2,4,256], index: 0, kind: input, shape index: {}]
  %s1 = inlined_call_operand.vmem [shape: bf16[19,256], index: 1, kind: input, shape index: {}]
  %s2 = inlined_call_operand.vmem [shape: bf16[32,19], index: 2, kind: input, shape index: {}]
  %s3 = inlined_call_operand.vmem [shape: bf16[8,36], index: 3, kind: input, shape index: {}]
  %s4 = inlined_call_operand.vmem [shape: bf16[8,72], index: 4, kind: input, shape index: {}]
  %s5 = inlined_call_operand.vmem [shape: bf16[4,36], index: 5, kind: input, shape index: {}]
  %s6 = inlined_call_operand.vmem [shape: bf16[8,36], index: 6, kind: input, shape index: {}]
  %s7 = inlined_call_operand.vmem [shape: bf16[4,36], index: 7, kind: input, shape index: {}]
  %s8 = inlined_call_operand.vmem [shape: f32[4,1], index: 8, kind: input, shape index: {}]
  %s9 = inlined_call_operand.vmem [shape: f32[4,1], index: 9, kind: input, shape index: {}]
  %s10 = inlined_call_operand.vmem [shape: f32[4,1], index: 10, kind: input, shape index: {}]
  %s11 = inlined_call_operand.vmem [shape: f32[4,1], index: 11, kind: input, shape index: {}]
  %s12 = inlined_call_operand.vmem [shape: f32[4,4], index: 12, kind: input, shape index: {}]
  %s13 = inlined_call_operand.vmem [shape: f32[4,1], index: 13, kind: input, shape index: {}]
  %s14 = inlined_call_operand.vmem [shape: f32[4,1], index: 14, kind: input, shape index: {}]
  %s15 = inlined_call_operand.vmem [shape: f32[4,1], index: 15, kind: input, shape index: {}]
  %s16 = inlined_call_operand.hbm [shape: f32[2,4,256], index: 16, kind: output, shape index: {}]
  %s17 = sld [smem:[#allocation0]]
  $region97: #{tpu_custom_call.1} parent=0
    _
  %s19 = ssub.s32 1, %s17
  %s20 = scalar_select 0, %s19, %s17
  $region1: #{tpu_custom_call.1} parent=0
    #allocation2 [shape = 'u8[8192]{0}', space=vmem, size = 0x2000, scoped, tag = 'output window, operand 0']
    #allocation3 [shape = 's32[2]{0}', space=sflag, size = 0x8, scoped, tag = 'scoped memory for tpu_custom_call.1']
    %21 = vsyncpa [#allocation3], 0
    %s22 = scalar_lea.sflag [#allocation3], 1
    %23 = vsyncpa %s22, 0
    loop: start=0, step=1, limit=4
    $region2: #{tpu_custom_call.1} parent=1 // loop_pre_header
      _
    $region3: #{tpu_custom_call.1} parent=1 // loop_header
      %s25 = sphi 0, %s29
      %p26 = scmp.ge.s32.totalorder %s25, 4
      %s35 = sphi 0, %s37
      %s38 = sphi 0, %s35
      %s39 = sphi 0, %s38
      %s55 = sphi 0, %s39
      %s59 = sphi 0, %s59
      %s61 = sphi 0, %s59
      %s62 = sphi 0, %s61
      %s76 = sphi 0, %s62
      %s80 = sphi 0, %s80
      %s82 = sphi 0, %s80
      %s83 = sphi 0, %s82
      %s97 = sphi 0, %s83
      %s101 = sphi 0, %s101
      %s103 = sphi 0, %s101
      %s104 = sphi 0, %s103
      %s118 = sphi 0, %s104
      %s122 = sphi 0, %s122
      %s124 = sphi 0, %s122
      %s125 = sphi 0, %s124
      %s139 = sphi 0, %s125
      %s143 = sphi 0, %s143
      %s145 = sphi 0, %s143
      %s146 = sphi 0, %s145
      %s160 = sphi 0, %s146
      %s164 = sphi 0, %s164
      %s166 = sphi 0, %s164
      %s167 = sphi 0, %s166
      %s181 = sphi 0, %s167
      %s185 = sphi 0, %s185
      %s187 = sphi 0, %s185
      %s188 = sphi 0, %s187
      %s202 = sphi 0, %s188
      %s206 = sphi 0, %s206
      %s208 = sphi 0, %s206
      %s209 = sphi 0, %s208
      %s223 = sphi 0, %s209
      %s227 = sphi 0, %s227
      %s229 = sphi 0, %s227
      %s230 = sphi 0, %s229
      %s244 = sphi 0, %s230
      %s248 = sphi 0, %s248
      %s250 = sphi 0, %s248
      %s251 = sphi 0, %s250
      %s265 = sphi 0, %s251
      %s269 = sphi 0, %s269
      %s271 = sphi 0, %s269
      %s272 = sphi 0, %s271
      %s286 = sphi 0, %s272
      %s290 = sphi 0, %s290
      %s292 = sphi 0, %s290
      %s293 = sphi 0, %s292
      %s307 = sphi 0, %s293
      %s311 = sphi 0, %s311
      %s313 = sphi 0, %s311
      %s314 = sphi 0, %s313
      %s328 = sphi 0, %s314
      %s332 = sphi 0, %s332
      %s334 = sphi 0, %s332
      %s335 = sphi 0, %s334
      %s349 = sphi 0, %s335
      %s353 = sphi 0, %s353
      %s355 = sphi 0, %s353
      %s356 = sphi 0, %s355
      %s370 = sphi 0, %s356
      %s376 = sphi 0, %s378
      %s379 = sphi 0, %s376
      %s380 = sphi 0, %s379
      %s396 = sphi 0, %s380
    $region4: #{tpu_custom_call.1} parent=1 // loop_header_branch
      %28 = sbr.rel (%p26) target = $region8
    $region5: #{tpu_custom_call.1} parent=1 // loop_body
      %s30 = ssub.s32 %s25, 1
      %s31 = ssub.s32 %s25, 2
      %s32 = sadd.s32 %s25, 1
      %s33 = ssub.s32 %s25, %s32
      %p34 = scmp.eq.s32.totalorder %s33, 0
      %s36 = sadd.s32 %s35, 1
      %s37 = scalar_select %p34, %s35, %s36
      %p40 = pneg %p34
      %p41 = scmp.eq.s32.totalorder %s25, 1
      %p42 = por %p40, %p41
      %p43 = scmp.ne.s32.totalorder %s35, %s38
      %p44 = scmp.eq.s32.totalorder %s25, 0
      %p45 = por %p43, %p44
      %p46 = scmp.ne.s32.totalorder %s35, %s38
      %p47 = scmp.eq.s32.totalorder %s30, 1
      %p48 = por %p46, %p47
      %p49 = scmp.ne.s32.totalorder %s38, %s39
      %p50 = scmp.eq.s32.totalorder %s30, 0
      %p51 = por %p49, %p50
      %p52 = scmp.ne.s32.totalorder %s38, %s39
      %p53 = scmp.eq.s32.totalorder %s31, 1
      %p54 = por %p52, %p53
      %p56 = scmp.ne.s32.totalorder %s39, %s55
      %p57 = scmp.eq.s32.totalorder %s31, 0
      %p58 = por %p56, %p57
      %s60 = sadd.s32 %s59, 1
      %p63 = scmp.eq.s32.totalorder %s25, 1
      %p64 = scmp.ne.s32.totalorder %s59, %s61
      %p65 = scmp.eq.s32.totalorder %s25, 0
      %p66 = por %p64, %p65
      %p67 = scmp.ne.s32.totalorder %s59, %s61
      %p68 = scmp.eq.s32.totalorder %s30, 1
      %p69 = por %p67, %p68
      %p70 = scmp.ne.s32.totalorder %s61, %s62
      %p71 = scmp.eq.s32.totalorder %s30, 0
      %p72 = por %p70, %p71
      %p73 = scmp.ne.s32.totalorder %s61, %s62
      %p74 = scmp.eq.s32.totalorder %s31, 1
      %p75 = por %p73, %p74
      %p77 = scmp.ne.s32.totalorder %s62, %s76
      %p78 = scmp.eq.s32.totalorder %s31, 0
      %p79 = por %p77, %p78
      %s81 = sadd.s32 %s80, 1
      %p84 = scmp.eq.s32.totalorder %s25, 1
      %p85 = scmp.ne.s32.totalorder %s80, %s82
      %p86 = scmp.eq.s32.totalorder %s25, 0
      %p87 = por %p85, %p86
      %p88 = scmp.ne.s32.totalorder %s80, %s82
      %p89 = scmp.eq.s32.totalorder %s30, 1
      %p90 = por %p88, %p89
      %p91 = scmp.ne.s32.totalorder %s82, %s83
      %p92 = scmp.eq.s32.totalorder %s30, 0
      %p93 = por %p91, %p92
      %p94 = scmp.ne.s32.totalorder %s82, %s83
      %p95 = scmp.eq.s32.totalorder %s31, 1
      %p96 = por %p94, %p95
      %p98 = scmp.ne.s32.totalorder %s83, %s97
      %p99 = scmp.eq.s32.totalorder %s31, 0
      %p100 = por %p98, %p99
      %s102 = sadd.s32 %s101, 1
      %p105 = scmp.eq.s32.totalorder %s25, 1
      %p106 = scmp.ne.s32.totalorder %s101, %s103
      %p107 = scmp.eq.s32.totalorder %s25, 0
      %p108 = por %p106, %p107
      %p109 = scmp.ne.s32.totalorder %s101, %s103
      %p110 = scmp.eq.s32.totalorder %s30, 1
      %p111 = por %p109, %p110
      %p112 = scmp.ne.s32.totalorder %s103, %s104
      %p113 = scmp.eq.s32.totalorder %s30, 0
      %p114 = por %p112, %p113
      %p115 = scmp.ne.s32.totalorder %s103, %s104
      %p116 = scmp.eq.s32.totalorder %s31, 1
      %p117 = por %p115, %p116
      %p119 = scmp.ne.s32.totalorder %s104, %s118
      %p120 = scmp.eq.s32.totalorder %s31, 0
      %p121 = por %p119, %p120
      %s123 = sadd.s32 %s122, 1
      %p126 = scmp.eq.s32.totalorder %s25, 1
      %p127 = scmp.ne.s32.totalorder %s122, %s124
      %p128 = scmp.eq.s32.totalorder %s25, 0
      %p129 = por %p127, %p128
      %p130 = scmp.ne.s32.totalorder %s122, %s124
      %p131 = scmp.eq.s32.totalorder %s30, 1
      %p132 = por %p130, %p131
      %p133 = scmp.ne.s32.totalorder %s124, %s125
      %p134 = scmp.eq.s32.totalorder %s30, 0
      %p135 = por %p133, %p134
      %p136 = scmp.ne.s32.totalorder %s124, %s125
      %p137 = scmp.eq.s32.totalorder %s31, 1
      %p138 = por %p136, %p137
      %p140 = scmp.ne.s32.totalorder %s125, %s139
      %p141 = scmp.eq.s32.totalorder %s31, 0
      %p142 = por %p140, %p141
      %s144 = sadd.s32 %s143, 1
      %p147 = scmp.eq.s32.totalorder %s25, 1
      %p148 = scmp.ne.s32.totalorder %s143, %s145
      %p149 = scmp.eq.s32.totalorder %s25, 0
      %p150 = por %p148, %p149
      %p151 = scmp.ne.s32.totalorder %s143, %s145
      %p152 = scmp.eq.s32.totalorder %s30, 1
      %p153 = por %p151, %p152
      %p154 = scmp.ne.s32.totalorder %s145, %s146
      %p155 = scmp.eq.s32.totalorder %s30, 0
      %p156 = por %p154, %p155
      %p157 = scmp.ne.s32.totalorder %s145, %s146
      %p158 = scmp.eq.s32.totalorder %s31, 1
      %p159 = por %p157, %p158
      %p161 = scmp.ne.s32.totalorder %s146, %s160
      %p162 = scmp.eq.s32.totalorder %s31, 0
      %p163 = por %p161, %p162
      %s165 = sadd.s32 %s164, 1
      %p168 = scmp.eq.s32.totalorder %s25, 1
      %p169 = scmp.ne.s32.totalorder %s164, %s166
      %p170 = scmp.eq.s32.totalorder %s25, 0
      %p171 = por %p169, %p170
      %p172 = scmp.ne.s32.totalorder %s164, %s166
      %p173 = scmp.eq.s32.totalorder %s30, 1
      %p174 = por %p172, %p173
      %p175 = scmp.ne.s32.totalorder %s166, %s167
      %p176 = scmp.eq.s32.totalorder %s30, 0
      %p177 = por %p175, %p176
      %p178 = scmp.ne.s32.totalorder %s166, %s167
      %p179 = scmp.eq.s32.totalorder %s31, 1
      %p180 = por %p178, %p179
      %p182 = scmp.ne.s32.totalorder %s167, %s181
      %p183 = scmp.eq.s32.totalorder %s31, 0
      %p184 = por %p182, %p183
      %s186 = sadd.s32 %s185, 1
      %p189 = scmp.eq.s32.totalorder %s25, 1
      %p190 = scmp.ne.s32.totalorder %s185, %s187
      %p191 = scmp.eq.s32.totalorder %s25, 0
      %p192 = por %p190, %p191
      %p193 = scmp.ne.s32.totalorder %s185, %s187
      %p194 = scmp.eq.s32.totalorder %s30, 1
      %p195 = por %p193, %p194
      %p196 = scmp.ne.s32.totalorder %s187, %s188
      %p197 = scmp.eq.s32.totalorder %s30, 0
      %p198 = por %p196, %p197
      %p199 = scmp.ne.s32.totalorder %s187, %s188
      %p200 = scmp.eq.s32.totalorder %s31, 1
      %p201 = por %p199, %p200
      %p203 = scmp.ne.s32.totalorder %s188, %s202
      %p204 = scmp.eq.s32.totalorder %s31, 0
      %p205 = por %p203, %p204
      %s207 = sadd.s32 %s206, 1
      %p210 = scmp.eq.s32.totalorder %s25, 1
      %p211 = scmp.ne.s32.totalorder %s206, %s208
      %p212 = scmp.eq.s32.totalorder %s25, 0
      %p213 = por %p211, %p212
      %p214 = scmp.ne.s32.totalorder %s206, %s208
      %p215 = scmp.eq.s32.totalorder %s30, 1
      %p216 = por %p214, %p215
      %p217 = scmp.ne.s32.totalorder %s208, %s209
      %p218 = scmp.eq.s32.totalorder %s30, 0
      %p219 = por %p217, %p218
      %p220 = scmp.ne.s32.totalorder %s208, %s209
      %p221 = scmp.eq.s32.totalorder %s31, 1
      %p222 = por %p220, %p221
      %p224 = scmp.ne.s32.totalorder %s209, %s223
      %p225 = scmp.eq.s32.totalorder %s31, 0
      %p226 = por %p224, %p225
      %s228 = sadd.s32 %s227, 1
      %p231 = scmp.eq.s32.totalorder %s25, 1
      %p232 = scmp.ne.s32.totalorder %s227, %s229
      %p233 = scmp.eq.s32.totalorder %s25, 0
      %p234 = por %p232, %p233
      %p235 = scmp.ne.s32.totalorder %s227, %s229
      %p236 = scmp.eq.s32.totalorder %s30, 1
      %p237 = por %p235, %p236
      %p238 = scmp.ne.s32.totalorder %s229, %s230
      %p239 = scmp.eq.s32.totalorder %s30, 0
      %p240 = por %p238, %p239
      %p241 = scmp.ne.s32.totalorder %s229, %s230
      %p242 = scmp.eq.s32.totalorder %s31, 1
      %p243 = por %p241, %p242
      %p245 = scmp.ne.s32.totalorder %s230, %s244
      %p246 = scmp.eq.s32.totalorder %s31, 0
      %p247 = por %p245, %p246
      %s249 = sadd.s32 %s248, 1
      %p252 = scmp.eq.s32.totalorder %s25, 1
      %p253 = scmp.ne.s32.totalorder %s248, %s250
      %p254 = scmp.eq.s32.totalorder %s25, 0
      %p255 = por %p253, %p254
      %p256 = scmp.ne.s32.totalorder %s248, %s250
      %p257 = scmp.eq.s32.totalorder %s30, 1
      %p258 = por %p256, %p257
      %p259 = scmp.ne.s32.totalorder %s250, %s251
      %p260 = scmp.eq.s32.totalorder %s30, 0
      %p261 = por %p259, %p260
      %p262 = scmp.ne.s32.totalorder %s250, %s251
      %p263 = scmp.eq.s32.totalorder %s31, 1
      %p264 = por %p262, %p263
      %p266 = scmp.ne.s32.totalorder %s251, %s265
      %p267 = scmp.eq.s32.totalorder %s31, 0
      %p268 = por %p266, %p267
      %s270 = sadd.s32 %s269, 1
      %p273 = scmp.eq.s32.totalorder %s25, 1
      %p274 = scmp.ne.s32.totalorder %s269, %s271
      %p275 = scmp.eq.s32.totalorder %s25, 0
      %p276 = por %p274, %p275
      %p277 = scmp.ne.s32.totalorder %s269, %s271
      %p278 = scmp.eq.s32.totalorder %s30, 1
      %p279 = por %p277, %p278
      %p280 = scmp.ne.s32.totalorder %s271, %s272
      %p281 = scmp.eq.s32.totalorder %s30, 0
      %p282 = por %p280, %p281
      %p283 = scmp.ne.s32.totalorder %s271, %s272
      %p284 = scmp.eq.s32.totalorder %s31, 1
      %p285 = por %p283, %p284
      %p287 = scmp.ne.s32.totalorder %s272, %s286
      %p288 = scmp.eq.s32.totalorder %s31, 0
      %p289 = por %p287, %p288
      %s291 = sadd.s32 %s290, 1
      %p294 = scmp.eq.s32.totalorder %s25, 1
      %p295 = scmp.ne.s32.totalorder %s290, %s292
      %p296 = scmp.eq.s32.totalorder %s25, 0
      %p297 = por %p295, %p296
      %p298 = scmp.ne.s32.totalorder %s290, %s292
      %p299 = scmp.eq.s32.totalorder %s30, 1
      %p300 = por %p298, %p299
      %p301 = scmp.ne.s32.totalorder %s292, %s293
      %p302 = scmp.eq.s32.totalorder %s30, 0
      %p303 = por %p301, %p302
      %p304 = scmp.ne.s32.totalorder %s292, %s293
      %p305 = scmp.eq.s32.totalorder %s31, 1
      %p306 = por %p304, %p305
      %p308 = scmp.ne.s32.totalorder %s293, %s307
      %p309 = scmp.eq.s32.totalorder %s31, 0
      %p310 = por %p308, %p309
      %s312 = sadd.s32 %s311, 1
      %p315 = scmp.eq.s32.totalorder %s25, 1
      %p316 = scmp.ne.s32.totalorder %s311, %s313
      %p317 = scmp.eq.s32.totalorder %s25, 0
      %p318 = por %p316, %p317
      %p319 = scmp.ne.s32.totalorder %s311, %s313
      %p320 = scmp.eq.s32.totalorder %s30, 1
      %p321 = por %p319, %p320
      %p322 = scmp.ne.s32.totalorder %s313, %s314
      %p323 = scmp.eq.s32.totalorder %s30, 0
      %p324 = por %p322, %p323
      %p325 = scmp.ne.s32.totalorder %s313, %s314
      %p326 = scmp.eq.s32.totalorder %s31, 1
      %p327 = por %p325, %p326
      %p329 = scmp.ne.s32.totalorder %s314, %s328
      %p330 = scmp.eq.s32.totalorder %s31, 0
      %p331 = por %p329, %p330
      %s333 = sadd.s32 %s332, 1
      %p336 = scmp.eq.s32.totalorder %s25, 1
      %p337 = scmp.ne.s32.totalorder %s332, %s334
      %p338 = scmp.eq.s32.totalorder %s25, 0
      %p339 = por %p337, %p338
      %p340 = scmp.ne.s32.totalorder %s332, %s334
      %p341 = scmp.eq.s32.totalorder %s30, 1
      %p342 = por %p340, %p341
      %p343 = scmp.ne.s32.totalorder %s334, %s335
      %p344 = scmp.eq.s32.totalorder %s30, 0
      %p345 = por %p343, %p344
      %p346 = scmp.ne.s32.totalorder %s334, %s335
      %p347 = scmp.eq.s32.totalorder %s31, 1
      %p348 = por %p346, %p347
      %p350 = scmp.ne.s32.totalorder %s335, %s349
      %p351 = scmp.eq.s32.totalorder %s31, 0
      %p352 = por %p350, %p351
      %s354 = sadd.s32 %s353, 1
      %p357 = scmp.eq.s32.totalorder %s25, 1
      %p358 = scmp.ne.s32.totalorder %s353, %s355
      %p359 = scmp.eq.s32.totalorder %s25, 0
      %p360 = por %p358, %p359
      %p361 = scmp.ne.s32.totalorder %s353, %s355
      %p362 = scmp.eq.s32.totalorder %s30, 1
      %p363 = por %p361, %p362
      %p364 = scmp.ne.s32.totalorder %s355, %s356
      %p365 = scmp.eq.s32.totalorder %s30, 0
      %p366 = por %p364, %p365
      %p367 = scmp.ne.s32.totalorder %s355, %s356
      %p368 = scmp.eq.s32.totalorder %s31, 1
      %p369 = por %p367, %p368
      %p371 = scmp.ne.s32.totalorder %s356, %s370
      %p372 = scmp.eq.s32.totalorder %s31, 0
      %p373 = por %p371, %p372
      %s374 = ssub.s32 %s25, %s32
      %p375 = scmp.eq.s32.totalorder %s374, 0
      %s377 = sadd.s32 %s376, 1
      %s378 = scalar_select %p375, %s376, %s377
      %p381 = pneg %p375
      %p382 = scmp.eq.s32.totalorder %s25, 1
      %p383 = por %p381, %p382
      %p384 = scmp.ne.s32.totalorder %s376, %s379
      %p385 = scmp.eq.s32.totalorder %s25, 0
      %p386 = por %p384, %p385
      %p387 = scmp.ne.s32.totalorder %s376, %s379
      %p388 = scmp.eq.s32.totalorder %s30, 1
      %p389 = por %p387, %p388
      %p390 = scmp.ne.s32.totalorder %s379, %s380
      %p391 = scmp.eq.s32.totalorder %s30, 0
      %p392 = por %p390, %p391
      %p393 = scmp.ne.s32.totalorder %s379, %s380
      %p394 = scmp.eq.s32.totalorder %s31, 1
      %p395 = por %p393, %p394
      %p397 = scmp.ne.s32.totalorder %s380, %s396
      %p398 = scmp.eq.s32.totalorder %s31, 0
      %p399 = por %p397, %p398
      %p400 = scmp.le.s32.totalorder 1, %s25
      %p401 = scmp.lt.s32.totalorder %s25, 3
      %p402 = pnand %p400, %p401
      %p403 = pneg %p402
      // Predicated region
      $region9: #{tpu_custom_call.1} parent=5 // pred_check
        _
      $region10: #{tpu_custom_call.1} parent=5 // pred_check_branch
        %405 = sbr.rel (%p402) target = $region12
      $region11: #{tpu_custom_call.1} parent=5 // pred_region
        %s406 = ssub.s32 %s25, 1
        // Predicated region
        $region13: #{tpu_custom_call.1} parent=11 // pred_check
          %p407 = pneg %p72
        $region14: #{tpu_custom_call.1} parent=11 // pred_check_branch
          %409 = sbr.rel (%p407) target = $region16
        $region15: #{tpu_custom_call.1} parent=11 // pred_region
          _
        $region16: #{tpu_custom_call.1} parent=11 // pred_fallthru
          _
        // Predicated region
        $region17: #{tpu_custom_call.1} parent=11 // pred_check
          %p410 = pneg %p93
        $region18: #{tpu_custom_call.1} parent=11 // pred_check_branch
          %412 = sbr.rel (%p410) target = $region20
        $region19: #{tpu_custom_call.1} parent=11 // pred_region
          _
        $region20: #{tpu_custom_call.1} parent=11 // pred_fallthru
          _
        // Predicated region
        $region21: #{tpu_custom_call.1} parent=11 // pred_check
          %p413 = pneg %p114
        $region22: #{tpu_custom_call.1} parent=11 // pred_check_branch
          %415 = sbr.rel (%p413) target = $region24
        $region23: #{tpu_custom_call.1} parent=11 // pred_region
          _
        $region24: #{tpu_custom_call.1} parent=11 // pred_fallthru
          _
        // Predicated region
        $region25: #{tpu_custom_call.1} parent=11 // pred_check
          %p416 = pneg %p135
        $region26: #{tpu_custom_call.1} parent=11 // pred_check_branch
          %418 = sbr.rel (%p416) target = $region28
        $region27: #{tpu_custom_call.1} parent=11 // pred_region
          _
        $region28: #{tpu_custom_call.1} parent=11 // pred_fallthru
          _
        // Predicated region
        $region29: #{tpu_custom_call.1} parent=11 // pred_check
          %p419 = pneg %p156
        $region30: #{tpu_custom_call.1} parent=11 // pred_check_branch
          %421 = sbr.rel (%p419) target = $region32
        $region31: #{tpu_custom_call.1} parent=11 // pred_region
          _
        $region32: #{tpu_custom_call.1} parent=11 // pred_fallthru
          _
        // Predicated region
        $region33: #{tpu_custom_call.1} parent=11 // pred_check
          %p422 = pneg %p177
        $region34: #{tpu_custom_call.1} parent=11 // pred_check_branch
          %424 = sbr.rel (%p422) target = $region36
        $region35: #{tpu_custom_call.1} parent=11 // pred_region
          _
        $region36: #{tpu_custom_call.1} parent=11 // pred_fallthru
          _
        // Predicated region
        $region37: #{tpu_custom_call.1} parent=11 // pred_check
          %p425 = pneg %p198
        $region38: #{tpu_custom_call.1} parent=11 // pred_check_branch
          %427 = sbr.rel (%p425) target = $region40
        $region39: #{tpu_custom_call.1} parent=11 // pred_region
          _
        $region40: #{tpu_custom_call.1} parent=11 // pred_fallthru
          _
        // Predicated region
        $region41: #{tpu_custom_call.1} parent=11 // pred_check
          %p428 = pneg %p219
        $region42: #{tpu_custom_call.1} parent=11 // pred_check_branch
          %430 = sbr.rel (%p428) target = $region44
        $region43: #{tpu_custom_call.1} parent=11 // pred_region
          _
        $region44: #{tpu_custom_call.1} parent=11 // pred_fallthru
          _
        // Predicated region
        $region45: #{tpu_custom_call.1} parent=11 // pred_check
          %p431 = pneg %p240
        $region46: #{tpu_custom_call.1} parent=11 // pred_check_branch
          %433 = sbr.rel (%p431) target = $region48
        $region47: #{tpu_custom_call.1} parent=11 // pred_region
          _
        $region48: #{tpu_custom_call.1} parent=11 // pred_fallthru
          _
        // Predicated region
        $region49: #{tpu_custom_call.1} parent=11 // pred_check
          %p434 = pneg %p261
        $region50: #{tpu_custom_call.1} parent=11 // pred_check_branch
          %436 = sbr.rel (%p434) target = $region52
        $region51: #{tpu_custom_call.1} parent=11 // pred_region
          _
        $region52: #{tpu_custom_call.1} parent=11 // pred_fallthru
          _
        // Predicated region
        $region53: #{tpu_custom_call.1} parent=11 // pred_check
          %p437 = pneg %p282
        $region54: #{tpu_custom_call.1} parent=11 // pred_check_branch
          %439 = sbr.rel (%p437) target = $region56
        $region55: #{tpu_custom_call.1} parent=11 // pred_region
          _
        $region56: #{tpu_custom_call.1} parent=11 // pred_fallthru
          _
        // Predicated region
        $region57: #{tpu_custom_call.1} parent=11 // pred_check
          %p440 = pneg %p303
        $region58: #{tpu_custom_call.1} parent=11 // pred_check_branch
          %442 = sbr.rel (%p440) target = $region60
        $region59: #{tpu_custom_call.1} parent=11 // pred_region
          _
        $region60: #{tpu_custom_call.1} parent=11 // pred_fallthru
          _
        // Predicated region
        $region61: #{tpu_custom_call.1} parent=11 // pred_check
          %p443 = pneg %p324
        $region62: #{tpu_custom_call.1} parent=11 // pred_check_branch
          %445 = sbr.rel (%p443) target = $region64
        $region63: #{tpu_custom_call.1} parent=11 // pred_region
          _
        $region64: #{tpu_custom_call.1} parent=11 // pred_fallthru
          _
        // Predicated region
        $region65: #{tpu_custom_call.1} parent=11 // pred_check
          %p446 = pneg %p345
        $region66: #{tpu_custom_call.1} parent=11 // pred_check_branch
          %448 = sbr.rel (%p446) target = $region68
        $region67: #{tpu_custom_call.1} parent=11 // pred_region
          _
        $region68: #{tpu_custom_call.1} parent=11 // pred_fallthru
          _
        // Predicated region
        $region69: #{tpu_custom_call.1} parent=11 // pred_check
          %p449 = pneg %p366
        $region70: #{tpu_custom_call.1} parent=11 // pred_check_branch
          %451 = sbr.rel (%p449) target = $region72
        $region71: #{tpu_custom_call.1} parent=11 // pred_region
          _
        $region72: #{tpu_custom_call.1} parent=11 // pred_fallthru
          _
      $region12: #{tpu_custom_call.1} parent=5 // pred_fallthru
        _
      %p452 = scmp.lt.s32.totalorder %s25, 2
      // Predicated region
      $region73: #{tpu_custom_call.1} parent=5 // pred_check
        %p453 = pneg %p452
      $region74: #{tpu_custom_call.1} parent=5 // pred_check_branch
        %455 = sbr.rel (%p453) target = $region76
      $region75: #{tpu_custom_call.1} parent=5 // pred_region
        // Predicated region
        $region77: #{tpu_custom_call.1} parent=75 // pred_check
          %p456 = pneg %p45
        $region78: #{tpu_custom_call.1} parent=75 // pred_check_branch
          %458 = sbr.rel (%p456) target = $region80
        $region79: #{tpu_custom_call.1} parent=75 // pred_region
          %p459 = scmp.lt.s32.totalorder %s25, 1
          %s460 = scalar_select %p459, %s25, 1
          %s461 = smul.addr %s460, 2
          %s462 = smul.addr %s461, 4
          %s463 = scalar_lea.vmem %s0, %s462
        $region80: #{tpu_custom_call.1} parent=75 // pred_fallthru
          _
      $region76: #{tpu_custom_call.1} parent=5 // pred_fallthru
        _
      %p464 = scmp.le.s32.totalorder 1, %s25
      %p465 = scmp.lt.s32.totalorder %s25, 3
      %p466 = pnand %p464, %p465
      %p467 = pneg %p466
      // Predicated region
      $region81: #{tpu_custom_call.1} parent=5 // pred_check
        _
      $region82: #{tpu_custom_call.1} parent=5 // pred_check_branch
        %469 = sbr.rel (%p466) target = $region84
      $region83: #{tpu_custom_call.1} parent=5 // pred_region
        %s470 = ssub.s32 %s25, 1
        %p471 = scmp.lt.s32.totalorder %s30, 1
        %s472 = scalar_select %p471, %s30, 1
        %s473 = smul.addr %s472, 2
        %s474 = smul.addr %s473, 4
        %s475 = scalar_lea.vmem %s0, %s474
        %p476 = pneg %p51
        %p477 = pneg %p48
        %p478 = pneg %p72
        %p479 = pneg %p69
        %p480 = pneg %p93
        %p481 = pneg %p90
        %p482 = pneg %p114
        %p483 = pneg %p111
        %p484 = pneg %p135
        %p485 = pneg %p132
        %p486 = pneg %p156
        %p487 = pneg %p153
        %p488 = pneg %p177
        %p489 = pneg %p174
        %p490 = pneg %p198
        %p491 = pneg %p195
        %p492 = pneg %p219
        %p493 = pneg %p216
        %p494 = pneg %p240
        %p495 = pneg %p237
        %p496 = pneg %p261
        %p497 = pneg %p258
        %p498 = pneg %p282
        %p499 = pneg %p279
        %p500 = pneg %p303
        %p501 = pneg %p300
        %p502 = pneg %p324
        %p503 = pneg %p321
        %p504 = pneg %p345
        %p505 = pneg %p342
        %p506 = pneg %p366
        %p507 = pneg %p363
        %p508 = pneg %p392
        %p509 = pneg %p389
        %s510 = sand.u32 %s379, 1
        %s511 = scalar_lea.sflag [#allocation3], %s510
        %s512 = sand.u32 %s379, 1
        %s513 = smul.addr %s512, 8
        %s514 = scalar_lea.vmem [#allocation2], %s513
        %p515 = scmp.lt.s32.totalorder %s30, 1
        %s516 = scalar_select %p515, %s30, 1
        %s517 = smul.addr %s516, 2
        %s518 = smul.addr %s517, 4
        %s519 = scalar_lea.vmem %s0, %s518
        %v521 = vld [vmem:[%s519] sm:$0xff]
        %v522 = vlaneseq
        %v523 = vand.u32 %v522, 127
        %v524 = vadd.s32 %v523, 128
        %v525 = vand.u32 %v523, 15
        %v526 = vand.u32 %v524, 15
        %v527 = vadd.s32 %v523, 4294967279
        %v528 = vadd.s32 %v524, 4294967279
        %vm529 = vcmp.ge.s32.totalorder %v527, 0
        %vm530 = vcmp.ge.s32.totalorder %v528, 0
        %vm531 = vcmp.lt.s32.totalorder %v527, 256
        %vm532 = vcmp.lt.s32.totalorder %v528, 256
        %vm533 = vmand %vm529, %vm531
        %vm534 = vmand %vm530, %vm532
        %vm535 = vcmp.ge.s32.totalorder %v525, 1
        %vm536 = vcmp.ge.s32.totalorder %v526, 1
        %vm537 = vmand %vm533, %vm535
        %vm538 = vmand %vm534, %vm536
        %v539 = vsel %vm537, 1, 0
        %v540 = vsel %vm538, 1, 0
        %v541 = vcvt.s32.f32 %v539
        %v542 = vcvt.s32.f32 %v540
        %v543 = vadd.s32 %v523, 4294967280
        %v544 = vadd.s32 %v524, 4294967280
        %vm545 = vcmp.ge.s32.totalorder %v543, 0
        %vm546 = vcmp.ge.s32.totalorder %v544, 0
        %vm547 = vcmp.lt.s32.totalorder %v543, 256
        %vm548 = vcmp.lt.s32.totalorder %v544, 256
        %vm549 = vmand %vm545, %vm547
        %vm550 = vmand %vm546, %vm548
        %v551 = vsel %vm549, 1, 0
        %v552 = vsel %vm550, 1, 0
        %v553 = vcvt.s32.f32 %v551
        %v554 = vcvt.s32.f32 %v552
        %v555 = vadd.s32 %v523, 4294967281
        %v556 = vadd.s32 %v524, 4294967281
        %vm557 = vcmp.ge.s32.totalorder %v555, 0
        %vm558 = vcmp.ge.s32.totalorder %v556, 0
        %vm559 = vcmp.lt.s32.totalorder %v555, 256
        %vm560 = vcmp.lt.s32.totalorder %v556, 256
        %vm561 = vmand %vm557, %vm559
        %vm562 = vmand %vm558, %vm560
        %vm563 = vcmp.le.s32.totalorder %v525, 14
        %vm564 = vcmp.le.s32.totalorder %v526, 14
        %vm565 = vmand %vm561, %vm563
        %vm566 = vmand %vm562, %vm564
        %v567 = vsel %vm565, 1, 0
        %v568 = vsel %vm566, 1, 0
        %v569 = vcvt.s32.f32 %v567
        %v570 = vcvt.s32.f32 %v568
        %v571 = vadd.s32 %v523, 4294967295
        %v572 = vadd.s32 %v524, 4294967295
        %vm573 = vcmp.ge.s32.totalorder %v571, 0
        %vm574 = vcmp.ge.s32.totalorder %v572, 0
        %vm575 = vcmp.lt.s32.totalorder %v571, 256
        %vm576 = vcmp.lt.s32.totalorder %v572, 256
        %vm577 = vmand %vm573, %vm575
        %vm578 = vmand %vm574, %vm576
        %vm579 = vmand %vm577, %vm535
        %vm580 = vmand %vm578, %vm536
        %v581 = vsel %vm579, 1, 0
        %v582 = vsel %vm580, 1, 0
        %v583 = vcvt.s32.f32 %v581
        %v584 = vcvt.s32.f32 %v582
        %v585 = vadd.s32 %v523, 1
        %v586 = vadd.s32 %v524, 1
        %vm587 = vcmp.ge.s32.totalorder %v585, 0
        %vm588 = vcmp.ge.s32.totalorder %v586, 0
        %vm589 = vcmp.lt.s32.totalorder %v585, 256
        %vm590 = vcmp.lt.s32.totalorder %v586, 256
        %vm591 = vmand %vm587, %vm589
        %vm592 = vmand %vm588, %vm590
        %vm593 = vmand %vm591, %vm563
        %vm594 = vmand %vm592, %vm564
        %v595 = vsel %vm593, 1, 0
        %v596 = vsel %vm594, 1, 0
        %v597 = vcvt.s32.f32 %v595
        %v598 = vcvt.s32.f32 %v596
        %v599 = vadd.s32 %v523, 15
        %v600 = vadd.s32 %v524, 15
        %vm601 = vcmp.ge.s32.totalorder %v599, 0
        %vm602 = vcmp.ge.s32.totalorder %v600, 0
        %vm603 = vcmp.lt.s32.totalorder %v599, 256
        %vm604 = vcmp.lt.s32.totalorder %v600, 256
        %vm605 = vmand %vm601, %vm603
        %vm606 = vmand %vm602, %vm604
        %vm607 = vmand %vm605, %vm535
        %vm608 = vmand %vm606, %vm536
        %v609 = vsel %vm607, 1, 0
        %v610 = vsel %vm608, 1, 0
        %v611 = vcvt.s32.f32 %v609
        %v612 = vcvt.s32.f32 %v610
        %v613 = vadd.s32 %v523, 16
        %v614 = vadd.s32 %v524, 16
        %vm615 = vcmp.ge.s32.totalorder %v613, 0
        %vm616 = vcmp.ge.s32.totalorder %v614, 0
        %vm617 = vcmp.lt.s32.totalorder %v613, 256
        %vm618 = vcmp.lt.s32.totalorder %v614, 256
        %vm619 = vmand %vm615, %vm617
        %vm620 = vmand %vm616, %vm618
        %v621 = vsel %vm619, 1, 0
        %v622 = vsel %vm620, 1, 0
        %v623 = vcvt.s32.f32 %v621
        %v624 = vcvt.s32.f32 %v622
        %v625 = vadd.s32 %v523, 17
        %v626 = vadd.s32 %v524, 17
        %vm627 = vcmp.ge.s32.totalorder %v625, 0
        %vm628 = vcmp.ge.s32.totalorder %v626, 0
        %vm629 = vcmp.lt.s32.totalorder %v625, 256
        %vm630 = vcmp.lt.s32.totalorder %v626, 256
        %vm631 = vmand %vm627, %vm629
        %vm632 = vmand %vm628, %vm630
        %vm633 = vmand %vm631, %vm563
        %vm634 = vmand %vm632, %vm564
        %v635 = vsel %vm633, 1, 0
        %v636 = vsel %vm634, 1, 0
        %v637 = vcvt.s32.f32 %v635
        %v638 = vcvt.s32.f32 %v636
        %v639 = vld [vmem:[%s2] sm:$0xf]
        %v640 = vld [vmem:[%s2 + $0x4] sm:$0xf]
        %v641 = vld [vmem:[%s2 + $0x8] sm:$0xf]
        %v642 = vld [vmem:[%s2 + $0xc] sm:$0xf]
        %v643 = vld [vmem:[%s1] sm:$0xff]
        %v644 = vld [vmem:[%s1 + $0x8] sm:$0xff]
        %v645 = vld [vmem:[%s1 + $0x10] sm:$0x33]
        %v650 = vunpack.c.l.b16 %v639
        %v651 = vunpack.c.l.b16 %v640
        %v652 = vunpack.c.l.b16 %v641
        %v653 = vunpack.c.l.b16 %v642
        %v654 = vpack.c.b16 %v651, %v650
        %v655 = vpack.c.b16 %v653, %v652
        %v659 = vunpack.c.l.b16 %v643
        %v660 = vunpack.c.h.b16 %v643
        %v661 = vunpack.c.l.b16 %v644
        %v662 = vunpack.c.h.b16 %v644
        %v663 = vunpack.c.l.b16 %v645
        %v664 = vunpack.c.h.b16 %v645
        %v665 = vpack.c.b16 %v661, %v659
        %v666 = vpack.c.b16 %v662, %v660
        %v667 = vpack.c.b16 %v663, %v663
        %v668 = vpack.c.b16 %v664, %v664
        %vm671 = vcmask 154624
        %v673 = vsel %vm671, %v654, 0
        %v676 = vsel %vm671, %v655, 0
        %vm678 = vcmask 1040384
        %vm679 = vcmask 1041408
        %v680 = vsel %vm678, 4294967295, 65535
        %v681 = vsel %vm679, %v680, 0
        %v683 = vand.u32 %v667, %v681
        %v686 = vand.u32 %v668, %v681
        %688 = vmatprep.subr.bf16.mxu0 0
        %689 = vmatpush1.bf16.msra.mxu0 0
        %690 = vmatprep.subr.bf16.mxu0 0
        %691 = vmatpush1.bf16.msra.mxu0 0
        %692 = vmatprep.subr.bf16.mxu0 0
        %693 = vmatpush1.bf16.msra.mxu0 0
        %694 = vmatprep.subr.bf16.mxu0 0
        %695 = vmatpush1.bf16.msra.mxu0 0
        %696 = vmatprep.subr.bf16.mxu0 0
        %697 = vmatpush1.bf16.msra.mxu0 0
        %698 = vmatprep.subr.bf16.mxu0 0
        %699 = vmatpush1.bf16.msra.mxu0 0
        %700 = vmatprep.subr.bf16.mxu0 %v686
        %701 = vmatpush1.bf16.msra.mxu0 %v683
        %702 = vmatprep.subr.bf16.mxu0 %v666
        %703 = vmatpush1.bf16.msra.mxu0 %v665
        %704 = vmatprep.subr.bf16.mxu0 0
        %705 = vmatpush2.bf16.msra.mxu0 0
        %706 = vmatprep.subr.bf16.mxu0 0
        %707 = vmatpush2.bf16.msra.mxu0 0
        %708 = vmatprep.subr.bf16.mxu0 0
        %709 = vmatpush2.bf16.msra.mxu0 0
        %710 = vmatprep.subr.bf16.mxu0 0
        %711 = vmatpush2.bf16.msra.mxu0 0
        %712 = vmatprep.subr.bf16.mxu0 0
        %713 = vmatpush2.bf16.msra.mxu0 0
        %714 = vmatprep.subr.bf16.mxu0 0
        %715 = vmatpush2.bf16.msra.mxu0 0
        %716 = vmatprep.subr.bf16.mxu0 0
        %717 = vmatpush2.bf16.msra.mxu0 0
        %718 = vmatprep.subr.bf16.mxu0 0
        %719 = vmatpush2.bf16.msra.mxu0 0
        %720 = vmatprep.mubr.bf16.mxu0 0
        %721 = vmatmul.mubr.bf16.gmra.mxu0 %v673
        %v722 = vpop.f32.mrf.mxu0
        %v723 = vadd.f32 0.0, %v722
        %v724 = vpop.f32.mrf.mxu0
        %v725 = vadd.f32 0.0, %v724
        %v726 = vpop.f32.mrf.mxu0
        %v727 = vadd.f32 0.0, %v726
        %v728 = vpop.f32.mrf.mxu0
        %v729 = vadd.f32 0.0, %v728
        %730 = vmatprep.mubr.bf16.mxu0 0
        %731 = vmatmul.mubr.bf16.gmra.mxu0 %v676
        %v732 = vpop.f32.mrf.mxu0
        %v733 = vadd.f32 0.0, %v732
        %v734 = vpop.f32.mrf.mxu0
        %v735 = vadd.f32 0.0, %v734
        %v736 = vpop.f32.mrf.mxu0
        %v737 = vadd.f32 0.0, %v736
        %v738 = vpop.f32.mrf.mxu0
        %v739 = vadd.f32 0.0, %v738
        %740 = vdwg.mxu0
        %v741 = vld [vmem:[%s8] sm:$0xf]
        %v742 = vld [vmem:[%s9] sm:$0xf]
        %v744 = vcombine.high %v521, %v521
        %vm746 = vcmask 1043456
        %v747 = vsel %vm746, %v521, 0.0
        %v748 = vrot.slane %v747, 4
        %v749 = vadd.f32 %v747, %v748
        %v750 = vrot.slane %v749, 2
        %v751 = vadd.f32 %v749, %v750
        %v752 = vrot.slane %v751, 1
        %v753 = vadd.f32 %v751, %v752
        %v754 = vsel %vm746, %v744, 0.0
        %v755 = vrot.slane %v754, 4
        %v756 = vadd.f32 %v754, %v755
        %v757 = vrot.slane %v756, 2
        %v758 = vadd.f32 %v756, %v757
        %v759 = vrot.slane %v758, 1
        %v760 = vadd.f32 %v758, %v759
        %v761 = vrcp.pop 4.0
        %v762 = vmul.f32 %v753, %v761
        %v763 = vmul.f32 %v760, %v761
        %v766 = vcombine.low %v762, %v763
        %v768 = vsub.f32 %v521, %v766
        %v769 = vmul.f32 %v768, %v768
        %v771 = vcombine.high %v769, %v769
        %v773 = vsel %vm746, %v769, 0.0
        %v774 = vrot.slane %v773, 4
        %v775 = vadd.f32 %v773, %v774
        %v776 = vrot.slane %v775, 2
        %v777 = vadd.f32 %v775, %v776
        %v778 = vrot.slane %v777, 1
        %v779 = vadd.f32 %v777, %v778
        %v780 = vsel %vm746, %v771, 0.0
        %v781 = vrot.slane %v780, 4
        %v782 = vadd.f32 %v780, %v781
        %v783 = vrot.slane %v782, 2
        %v784 = vadd.f32 %v782, %v783
        %v785 = vrot.slane %v784, 1
        %v786 = vadd.f32 %v784, %v785
        %v787 = vmul.f32 %v779, %v761
        %v788 = vmul.f32 %v786, %v761
        %v789 = vadd.f32 %v787, 1e-06
        %v790 = vadd.f32 %v788, 1e-06
        %v791 = vrsqrt.pop %v789
        %v792 = vrsqrt.pop %v790
        %v795 = vcombine.low %v791, %v792
        %v797 = vmul.f32 %v768, %v795
        %799 = vset.pattern.permute.xlu0 0
        %800 = vperm.xlu0 %799, %v741
        %v801 = vpop.permute.xlu0 %800
        %v804 = vcombine.high %v797, %v797
        %v806 = vmul.f32 %v801, %v797
        %v807 = vmul.f32 %v801, %v804
        %809 = vset.pattern.permute.xlu0 0
        %810 = vperm.xlu0 %809, %v742
        %v811 = vpop.permute.xlu0 %810
        %v813 = vadd.f32 %v806, %v811
        %v814 = vadd.f32 %v807, %v811
        %815 = vrot.lane.b32.xlu0 %v813, 17
        %v816 = vpop.permute.xlu0 %815
        %817 = vrot.lane.b32.xlu0 %v814, 17
        %v818 = vpop.permute.xlu0 %817
        %vm819 = vcmp.lt.s32.totalorder %v523, 17
        %v820 = vsel %vm819, %v816, %v818
        %v821 = vsel %vm819, %v818, %v816
        %v822 = vmul.f32 %v821, %v541
        %v823 = vmul.f32 %v820, %v542
        %824 = vrot.lane.b32.xlu0 %v813, 16
        %v825 = vpop.permute.xlu0 %824
        %826 = vrot.lane.b32.xlu0 %v814, 16
        %v827 = vpop.permute.xlu0 %826
        %vm828 = vcmp.lt.s32.totalorder %v523, 16
        %v829 = vsel %vm828, %v825, %v827
        %v830 = vsel %vm828, %v827, %v825
        %v831 = vmul.f32 %v830, %v553
        %v832 = vmul.f32 %v829, %v554
        %833 = vrot.lane.b32.xlu0 %v813, 15
        %v834 = vpop.permute.xlu0 %833
        %835 = vrot.lane.b32.xlu0 %v814, 15
        %v836 = vpop.permute.xlu0 %835
        %vm837 = vcmp.lt.s32.totalorder %v523, 15
        %v838 = vsel %vm837, %v834, %v836
        %v839 = vsel %vm837, %v836, %v834
        %v840 = vmul.f32 %v839, %v569
        %v841 = vmul.f32 %v838, %v570
        %842 = vrot.lane.b32.xlu0 %v813, 1
        %v843 = vpop.permute.xlu0 %842
        %844 = vrot.lane.b32.xlu0 %v814, 1
        %v845 = vpop.permute.xlu0 %844
        %vm846 = vcmp.lt.s32.totalorder %v523, 1
        %v847 = vsel %vm846, %v843, %v845
        %v848 = vsel %vm846, %v845, %v843
        %v849 = vmul.f32 %v848, %v583
        %v850 = vmul.f32 %v847, %v584
        %851 = vrot.lane.b32.xlu0 %v813, 127
        %v852 = vpop.permute.xlu0 %851
        %853 = vrot.lane.b32.xlu0 %v814, 127
        %v854 = vpop.permute.xlu0 %853
        %vm855 = vcmp.lt.s32.totalorder %v523, 127
        %v856 = vsel %vm855, %v852, %v854
        %v857 = vsel %vm855, %v854, %v852
        %v858 = vmul.f32 %v856, %v597
        %v859 = vmul.f32 %v857, %v598
        %860 = vrot.lane.b32.xlu0 %v813, 113
        %v861 = vpop.permute.xlu0 %860
        %862 = vrot.lane.b32.xlu0 %v814, 113
        %v863 = vpop.permute.xlu0 %862
        %vm864 = vcmp.lt.s32.totalorder %v523, 113
        %v865 = vsel %vm864, %v861, %v863
        %v866 = vsel %vm864, %v863, %v861
        %v867 = vmul.f32 %v865, %v611
        %v868 = vmul.f32 %v866, %v612
        %869 = vrot.lane.b32.xlu0 %v813, 112
        %v870 = vpop.permute.xlu0 %869
        %871 = vrot.lane.b32.xlu0 %v814, 112
        %v872 = vpop.permute.xlu0 %871
        %vm873 = vcmp.lt.s32.totalorder %v523, 112
        %v874 = vsel %vm873, %v870, %v872
        %v875 = vsel %vm873, %v872, %v870
        %v876 = vmul.f32 %v874, %v623
        %v877 = vmul.f32 %v875, %v624
        %878 = vrot.lane.b32.xlu0 %v813, 111
        %v879 = vpop.permute.xlu0 %878
        %880 = vrot.lane.b32.xlu0 %v814, 111
        %v881 = vpop.permute.xlu0 %880
        %vm882 = vcmp.lt.s32.totalorder %v523, 111
        %v883 = vsel %vm882, %v879, %v881
        %v884 = vsel %vm882, %v881, %v879
        %v885 = vmul.f32 %v883, %v637
        %v886 = vmul.f32 %v884, %v638
        %v889 = vrot.slane %v831, 4
        %v890 = vrot.slane %v832, 4
        %v895 = vrot.slane %v849, 4
        %v896 = vrot.slane %v850, 4
        %v901 = vrot.slane %v858, 4
        %v902 = vrot.slane %v859, 4
        %v907 = vrot.slane %v876, 4
        %v908 = vrot.slane %v877, 4
        %v911 = vsel %vm746, %v822, %v889
        %v912 = vsel %vm746, %v823, %v890
        %v913 = vsel %vm746, %v840, %v895
        %v914 = vsel %vm746, %v841, %v896
        %v915 = vsel %vm746, %v813, %v901
        %v916 = vsel %vm746, %v814, %v902
        %v917 = vsel %vm746, %v867, %v907
        %v918 = vsel %vm746, %v868, %v908
        %v919 = vpack.c.bf16 %v913, %v911
        %v920 = vpack.c.bf16 %v914, %v912
        %v921 = vpack.c.bf16 %v917, %v915
        %v922 = vpack.c.bf16 %v918, %v916
        %v923 = vpack.c.bf16 %v885, %v885
        %v924 = vpack.c.bf16 %v886, %v886
        %v925 = vld [vmem:[%s3] sm:$0xf]
        %vm926 = vcmask 293888
        %v928 = vsel %vm926, %v925, 0
        %v931 = vsel %vm679, %v923, 0
        %v934 = vsel %vm679, %v924, 0
        %936 = vmatprep.subr.bf16.mxu0 0
        %937 = vmatpush1.bf16.msra.mxu0 0
        %938 = vmatprep.subr.bf16.mxu0 0
        %939 = vmatpush1.bf16.msra.mxu0 0
        %940 = vmatprep.subr.bf16.mxu0 0
        %941 = vmatpush1.bf16.msra.mxu0 0
        %942 = vmatprep.subr.bf16.mxu0 0
        %943 = vmatpush1.bf16.msra.mxu0 0
        %944 = vmatprep.subr.bf16.mxu0 0
        %945 = vmatpush1.bf16.msra.mxu0 0
        %946 = vmatprep.subr.bf16.mxu0 %v934
        %947 = vmatpush1.bf16.msra.mxu0 %v931
        %948 = vmatprep.subr.bf16.mxu0 %v922
        %949 = vmatpush1.bf16.msra.mxu0 %v921
        %950 = vmatprep.subr.bf16.mxu0 %v920
        %951 = vmatpush1.bf16.msra.mxu0 %v919
        %952 = vmatprep.subr.bf16.mxu0 0
        %953 = vmatpush2.bf16.msra.mxu0 0
        %954 = vmatprep.subr.bf16.mxu0 0
        %955 = vmatpush2.bf16.msra.mxu0 0
        %956 = vmatprep.subr.bf16.mxu0 0
        %957 = vmatpush2.bf16.msra.mxu0 0
        %958 = vmatprep.subr.bf16.mxu0 0
        %959 = vmatpush2.bf16.msra.mxu0 0
        %960 = vmatprep.subr.bf16.mxu0 0
        %961 = vmatpush2.bf16.msra.mxu0 0
        %962 = vmatprep.subr.bf16.mxu0 0
        %963 = vmatpush2.bf16.msra.mxu0 0
        %964 = vmatprep.subr.bf16.mxu0 0
        %965 = vmatpush2.bf16.msra.mxu0 0
        %966 = vmatprep.subr.bf16.mxu0 0
        %967 = vmatpush2.bf16.msra.mxu0 0
        %968 = vmatprep.mubr.bf16.mxu0 0
        %969 = vmatmul.mubr.bf16.gmra.mxu0 %v928
        %v970 = vpop.f32.mrf.mxu0
        %v971 = vadd.f32 %v723, %v970
        %v972 = vpop.f32.mrf.mxu0
        %v973 = vadd.f32 %v725, %v972
        %v974 = vpop.f32.mrf.mxu0
        %v975 = vpop.f32.mrf.mxu0
        %976 = vdwg.mxu0
        %977 = vrot.lane.b32.xlu0 %v971, 17
        %v978 = vpop.permute.xlu0 %977
        %979 = vrot.lane.b32.xlu0 %v973, 17
        %v980 = vpop.permute.xlu0 %979
        %v981 = vsel %vm819, %v978, %v980
        %v982 = vsel %vm819, %v980, %v978
        %v983 = vmul.f32 %v982, %v541
        %v984 = vmul.f32 %v981, %v542
        %985 = vrot.lane.b32.xlu0 %v971, 16
        %v986 = vpop.permute.xlu0 %985
        %987 = vrot.lane.b32.xlu0 %v973, 16
        %v988 = vpop.permute.xlu0 %987
        %v989 = vsel %vm828, %v986, %v988
        %v990 = vsel %vm828, %v988, %v986
        %v991 = vmul.f32 %v990, %v553
        %v992 = vmul.f32 %v989, %v554
        %993 = vrot.lane.b32.xlu0 %v971, 15
        %v994 = vpop.permute.xlu0 %993
        %995 = vrot.lane.b32.xlu0 %v973, 15
        %v996 = vpop.permute.xlu0 %995
        %v997 = vsel %vm837, %v994, %v996
        %v998 = vsel %vm837, %v996, %v994
        %v999 = vmul.f32 %v998, %v569
        %v1000 = vmul.f32 %v997, %v570
        %1001 = vrot.lane.b32.xlu0 %v971, 1
        %v1002 = vpop.permute.xlu0 %1001
        %1003 = vrot.lane.b32.xlu0 %v973, 1
        %v1004 = vpop.permute.xlu0 %1003
        %v1005 = vsel %vm846, %v1002, %v1004
        %v1006 = vsel %vm846, %v1004, %v1002
        %v1007 = vmul.f32 %v1006, %v583
        %v1008 = vmul.f32 %v1005, %v584
        %1009 = vrot.lane.b32.xlu0 %v971, 127
        %v1010 = vpop.permute.xlu0 %1009
        %1011 = vrot.lane.b32.xlu0 %v973, 127
        %v1012 = vpop.permute.xlu0 %1011
        %v1013 = vsel %vm855, %v1010, %v1012
        %v1014 = vsel %vm855, %v1012, %v1010
        %v1015 = vmul.f32 %v1013, %v597
        %v1016 = vmul.f32 %v1014, %v598
        %1017 = vrot.lane.b32.xlu0 %v971, 113
        %v1018 = vpop.permute.xlu0 %1017
        %1019 = vrot.lane.b32.xlu0 %v973, 113
        %v1020 = vpop.permute.xlu0 %1019
        %v1021 = vsel %vm864, %v1018, %v1020
        %v1022 = vsel %vm864, %v1020, %v1018
        %v1023 = vmul.f32 %v1021, %v611
        %v1024 = vmul.f32 %v1022, %v612
        %1025 = vrot.lane.b32.xlu0 %v971, 112
        %v1026 = vpop.permute.xlu0 %1025
        %1027 = vrot.lane.b32.xlu0 %v973, 112
        %v1028 = vpop.permute.xlu0 %1027
        %v1029 = vsel %vm873, %v1026, %v1028
        %v1030 = vsel %vm873, %v1028, %v1026
        %v1031 = vmul.f32 %v1029, %v623
        %v1032 = vmul.f32 %v1030, %v624
        %1033 = vrot.lane.b32.xlu0 %v971, 111
        %v1034 = vpop.permute.xlu0 %1033
        %1035 = vrot.lane.b32.xlu0 %v973, 111
        %v1036 = vpop.permute.xlu0 %1035
        %v1037 = vsel %vm882, %v1034, %v1036
        %v1038 = vsel %vm882, %v1036, %v1034
        %v1039 = vmul.f32 %v1037, %v637
        %v1040 = vmul.f32 %v1038, %v638
        %v1041 = vpack.c.bf16 %v991, %v983
        %v1042 = vpack.c.bf16 %v992, %v984
        %v1043 = vpack.c.bf16 %v1007, %v999
        %v1044 = vpack.c.bf16 %v1008, %v1000
        %v1045 = vpack.c.bf16 %v1015, %v971
        %v1046 = vpack.c.bf16 %v1016, %v973
        %v1047 = vpack.c.bf16 %v1031, %v1023
        %v1048 = vpack.c.bf16 %v1032, %v1024
        %v1049 = vpack.c.bf16 %v1039, %v1039
        %v1050 = vpack.c.bf16 %v1040, %v1040
        %v1051 = vld [vmem:[%s4] sm:$0xf]
        %vm1052 = vcmask 588800
        %v1054 = vsel %vm1052, %v1051, 0
        %v1057 = vsel %vm746, %v1049, 0
        %v1060 = vsel %vm746, %v1050, 0
        %1062 = vmatprep.subr.bf16.mxu0 0
        %1063 = vmatpush1.bf16.msra.mxu0 0
        %1064 = vmatprep.subr.bf16.mxu0 0
        %1065 = vmatpush1.bf16.msra.mxu0 0
        %1066 = vmatprep.subr.bf16.mxu0 0
        %1067 = vmatpush1.bf16.msra.mxu0 0
        %1068 = vmatprep.subr.bf16.mxu0 %v1060
        %1069 = vmatpush1.bf16.msra.mxu0 %v1057
        %1070 = vmatprep.subr.bf16.mxu0 %v1048
        %1071 = vmatpush1.bf16.msra.mxu0 %v1047
        %1072 = vmatprep.subr.bf16.mxu0 %v1046
        %1073 = vmatpush1.bf16.msra.mxu0 %v1045
        %1074 = vmatprep.subr.bf16.mxu0 %v1044
        %1075 = vmatpush1.bf16.msra.mxu0 %v1043
        %1076 = vmatprep.subr.bf16.mxu0 %v1042
        %1077 = vmatpush1.bf16.msra.mxu0 %v1041
        %1078 = vmatprep.subr.bf16.mxu0 0
        %1079 = vmatpush2.bf16.msra.mxu0 0
        %1080 = vmatprep.subr.bf16.mxu0 0
        %1081 = vmatpush2.bf16.msra.mxu0 0
        %1082 = vmatprep.subr.bf16.mxu0 0
        %1083 = vmatpush2.bf16.msra.mxu0 0
        %1084 = vmatprep.subr.bf16.mxu0 0
        %1085 = vmatpush2.bf16.msra.mxu0 0
        %1086 = vmatprep.subr.bf16.mxu0 0
        %1087 = vmatpush2.bf16.msra.mxu0 0
        %1088 = vmatprep.subr.bf16.mxu0 0
        %1089 = vmatpush2.bf16.msra.mxu0 0
        %1090 = vmatprep.subr.bf16.mxu0 0
        %1091 = vmatpush2.bf16.msra.mxu0 0
        %1092 = vmatprep.subr.bf16.mxu0 0
        %1093 = vmatpush2.bf16.msra.mxu0 0
        %1094 = vmatprep.mubr.bf16.mxu0 0
        %1095 = vmatmul.mubr.bf16.gmra.mxu0 %v1054
        %v1096 = vpop.f32.mrf.mxu0
        %v1097 = vadd.f32 %v727, %v1096
        %v1098 = vpop.f32.mrf.mxu0
        %v1099 = vadd.f32 %v729, %v1098
        %v1100 = vpop.f32.mrf.mxu0
        %v1101 = vpop.f32.mrf.mxu0
        %1102 = vdwg.mxu0
        %v1105 = vrot.slane %v1097, 4
        %v1106 = vrot.slane %v1099, 4
        %v1109 = vmul.f32 %v1097, %v1105
        %v1110 = vmul.f32 %v1099, %v1106
        %v1111 = vsel %vm746, %v1109, 0.0
        %v1112 = vsel %vm746, %v1110, 0.0
        %v1113 = vadd.f32 %v1111, %v1112
        %1114 = vadd.xlane.f32.xlu0 %v1113
        %v1115 = vpop.xlane.xlu0 %1114
        %v1116 = vrcp.pop 256.0
        %v1117 = vmul.f32 %v1115, %v1116
        %v1118 = vld [vmem:[%s12] sm:$0xf]
        %v1119 = vld [vmem:[%s13] sm:$0xf]
        %vm1120 = vcmask 31744
        %v1122 = vsel %vm1120, %v1118, 0
        %v1125 = vsel %vm746, %v1117, 0
        %1127 = vmatprep.subr.mxu0 0.0
        %1128 = vmatpush1.msra.mxu0 0.0
        %1129 = vmatprep.subr.mxu0 0.0
        %1130 = vmatpush1.msra.mxu0 0.0
        %1131 = vmatprep.subr.mxu0 0.0
        %1132 = vmatpush1.msra.mxu0 0.0
        %1133 = vmatprep.subr.mxu0 0.0
        %1134 = vmatpush1.msra.mxu0 0.0
        %1135 = vmatprep.subr.mxu0 0.0
        %1136 = vmatpush1.msra.mxu0 0.0
        %1137 = vmatprep.subr.mxu0 0.0
        %1138 = vmatpush1.msra.mxu0 0.0
        %1139 = vmatprep.subr.mxu0 0.0
        %1140 = vmatpush1.msra.mxu0 0.0
        %1141 = vmatprep.subr.mxu0 0.0
        %1142 = vmatpush1.msra.mxu0 0.0
        %1143 = vmatprep.subr.mxu0 0.0
        %1144 = vmatpush1.msra.mxu0 0.0
        %1145 = vmatprep.subr.mxu0 0.0
        %1146 = vmatpush1.msra.mxu0 0.0
        %1147 = vmatprep.subr.mxu0 0.0
        %1148 = vmatpush1.msra.mxu0 0.0
        %1149 = vmatprep.subr.mxu0 0.0
        %1150 = vmatpush1.msra.mxu0 0.0
        %1151 = vmatprep.subr.mxu0 0.0
        %1152 = vmatpush1.msra.mxu0 0.0
        %1153 = vmatprep.subr.mxu0 0.0
        %1154 = vmatpush1.msra.mxu0 0.0
        %1155 = vmatprep.subr.mxu0 0.0
        %1156 = vmatpush1.msra.mxu0 0.0
        %1157 = vmatprep.subr.mxu0 0.0
        %1158 = vmatpush1.msra.mxu0 %v1125
        %1159 = vmatprep.subr.mxu0 0.0
        %1160 = vmatpush2.msra.mxu0 0.0
        %1161 = vmatprep.subr.mxu0 0.0
        %1162 = vmatpush2.msra.mxu0 0.0
        %1163 = vmatprep.subr.mxu0 0.0
        %1164 = vmatpush2.msra.mxu0 0.0
        %1165 = vmatprep.subr.mxu0 0.0
        %1166 = vmatpush2.msra.mxu0 0.0
        %1167 = vmatprep.subr.mxu0 0.0
        %1168 = vmatpush2.msra.mxu0 0.0
        %1169 = vmatprep.subr.mxu0 0.0
        %1170 = vmatpush2.msra.mxu0 0.0
        %1171 = vmatprep.subr.mxu0 0.0
        %1172 = vmatpush2.msra.mxu0 0.0
        %1173 = vmatprep.subr.mxu0 0.0
        %1174 = vmatpush2.msra.mxu0 0.0
        %1175 = vmatprep.subr.mxu0 0.0
        %1176 = vmatpush2.msra.mxu0 0.0
        %1177 = vmatprep.subr.mxu0 0.0
        %1178 = vmatpush2.msra.mxu0 0.0
        %1179 = vmatprep.subr.mxu0 0.0
        %1180 = vmatpush2.msra.mxu0 0.0
        %1181 = vmatprep.subr.mxu0 0.0
        %1182 = vmatpush2.msra.mxu0 0.0
        %1183 = vmatprep.subr.mxu0 0.0
        %1184 = vmatpush2.msra.mxu0 0.0
        %1185 = vmatprep.subr.mxu0 0.0
        %1186 = vmatpush2.msra.mxu0 0.0
        %1187 = vmatprep.subr.mxu0 0.0
        %1188 = vmatpush2.msra.mxu0 0.0
        %1189 = vmatprep.subr.mxu0 0.0
        %1190 = vmatpush2.msra.mxu0 0.0
        %1191 = vmatprep.mubr.f32.mxu0 0.0
        %1192 = vmatmul.mubr.f32.gmra.mxu0 %v1122
        %v1193 = vpop.f32.mrf.mxu0
        %v1194 = vadd.f32 %v1119, %v1193
        %v1195 = vpop.f32.mrf.mxu0
        %1196 = vdwg.mxu0
        %1198 = vset.pattern.permute.xlu0 0
        %1199 = vperm.xlu0 %1198, %v1194
        %v1200 = vpop.permute.xlu0 %1199
        %v1202 = vmul.f32 %v1109, %v1200
        %v1203 = vmul.f32 %v1110, %v1200
        %1204 = vrot.lane.b32.xlu0 %v1202, 17
        %v1205 = vpop.permute.xlu0 %1204
        %1206 = vrot.lane.b32.xlu0 %v1203, 17
        %v1207 = vpop.permute.xlu0 %1206
        %v1208 = vsel %vm819, %v1205, %v1207
        %v1209 = vsel %vm819, %v1207, %v1205
        %v1210 = vmul.f32 %v1209, %v541
        %v1211 = vmul.f32 %v1208, %v542
        %1212 = vrot.lane.b32.xlu0 %v1202, 16
        %v1213 = vpop.permute.xlu0 %1212
        %1214 = vrot.lane.b32.xlu0 %v1203, 16
        %v1215 = vpop.permute.xlu0 %1214
        %v1216 = vsel %vm828, %v1213, %v1215
        %v1217 = vsel %vm828, %v1215, %v1213
        %v1218 = vmul.f32 %v1217, %v553
        %v1219 = vmul.f32 %v1216, %v554
        %1220 = vrot.lane.b32.xlu0 %v1202, 15
        %v1221 = vpop.permute.xlu0 %1220
        %1222 = vrot.lane.b32.xlu0 %v1203, 15
        %v1223 = vpop.permute.xlu0 %1222
        %v1224 = vsel %vm837, %v1221, %v1223
        %v1225 = vsel %vm837, %v1223, %v1221
        %v1226 = vmul.f32 %v1225, %v569
        %v1227 = vmul.f32 %v1224, %v570
        %1228 = vrot.lane.b32.xlu0 %v1202, 1
        %v1229 = vpop.permute.xlu0 %1228
        %1230 = vrot.lane.b32.xlu0 %v1203, 1
        %v1231 = vpop.permute.xlu0 %1230
        %v1232 = vsel %vm846, %v1229, %v1231
        %v1233 = vsel %vm846, %v1231, %v1229
        %v1234 = vmul.f32 %v1233, %v583
        %v1235 = vmul.f32 %v1232, %v584
        %1236 = vrot.lane.b32.xlu0 %v1202, 127
        %v1237 = vpop.permute.xlu0 %1236
        %1238 = vrot.lane.b32.xlu0 %v1203, 127
        %v1239 = vpop.permute.xlu0 %1238
        %v1240 = vsel %vm855, %v1237, %v1239
        %v1241 = vsel %vm855, %v1239, %v1237
        %v1242 = vmul.f32 %v1240, %v597
        %v1243 = vmul.f32 %v1241, %v598
        %1244 = vrot.lane.b32.xlu0 %v1202, 113
        %v1245 = vpop.permute.xlu0 %1244
        %1246 = vrot.lane.b32.xlu0 %v1203, 113
        %v1247 = vpop.permute.xlu0 %1246
        %v1248 = vsel %vm864, %v1245, %v1247
        %v1249 = vsel %vm864, %v1247, %v1245
        %v1250 = vmul.f32 %v1248, %v611
        %v1251 = vmul.f32 %v1249, %v612
        %1252 = vrot.lane.b32.xlu0 %v1202, 112
        %v1253 = vpop.permute.xlu0 %1252
        %1254 = vrot.lane.b32.xlu0 %v1203, 112
        %v1255 = vpop.permute.xlu0 %1254
        %v1256 = vsel %vm873, %v1253, %v1255
        %v1257 = vsel %vm873, %v1255, %v1253
        %v1258 = vmul.f32 %v1256, %v623
        %v1259 = vmul.f32 %v1257, %v624
        %1260 = vrot.lane.b32.xlu0 %v1202, 111
        %v1261 = vpop.permute.xlu0 %1260
        %1262 = vrot.lane.b32.xlu0 %v1203, 111
        %v1263 = vpop.permute.xlu0 %1262
        %v1264 = vsel %vm882, %v1261, %v1263
        %v1265 = vsel %vm882, %v1263, %v1261
        %v1266 = vmul.f32 %v1264, %v637
        %v1267 = vmul.f32 %v1265, %v638
        %v1270 = vrot.slane %v1218, 4
        %v1271 = vrot.slane %v1219, 4
        %v1276 = vrot.slane %v1234, 4
        %v1277 = vrot.slane %v1235, 4
        %v1282 = vrot.slane %v1242, 4
        %v1283 = vrot.slane %v1243, 4
        %v1288 = vrot.slane %v1258, 4
        %v1289 = vrot.slane %v1259, 4
        %v1292 = vsel %vm746, %v1210, %v1270
        %v1293 = vsel %vm746, %v1211, %v1271
        %v1294 = vsel %vm746, %v1226, %v1276
        %v1295 = vsel %vm746, %v1227, %v1277
        %v1296 = vsel %vm746, %v1202, %v1282
        %v1297 = vsel %vm746, %v1203, %v1283
        %v1298 = vsel %vm746, %v1250, %v1288
        %v1299 = vsel %vm746, %v1251, %v1289
        %v1300 = vpack.c.bf16 %v1294, %v1292
        %v1301 = vpack.c.bf16 %v1295, %v1293
        %v1302 = vpack.c.bf16 %v1298, %v1296
        %v1303 = vpack.c.bf16 %v1299, %v1297
        %v1304 = vpack.c.bf16 %v1266, %v1266
        %v1305 = vpack.c.bf16 %v1267, %v1267
        %v1306 = vld [vmem:[%s5] sm:$0x3]
        %v1308 = vsel %vm926, %v1306, 0
        %v1311 = vsel %vm679, %v1304, 0
        %v1314 = vsel %vm679, %v1305, 0
        %1316 = vmatprep.subr.bf16.mxu0 0
        %1317 = vmatpush1.bf16.msra.mxu0 0
        %1318 = vmatprep.subr.bf16.mxu0 0
        %1319 = vmatpush1.bf16.msra.mxu0 0
        %1320 = vmatprep.subr.bf16.mxu0 0
        %1321 = vmatpush1.bf16.msra.mxu0 0
        %1322 = vmatprep.subr.bf16.mxu0 0
        %1323 = vmatpush1.bf16.msra.mxu0 0
        %1324 = vmatprep.subr.bf16.mxu0 0
        %1325 = vmatpush1.bf16.msra.mxu0 0
        %1326 = vmatprep.subr.bf16.mxu0 %v1314
        %1327 = vmatpush1.bf16.msra.mxu0 %v1311
        %1328 = vmatprep.subr.bf16.mxu0 %v1303
        %1329 = vmatpush1.bf16.msra.mxu0 %v1302
        %1330 = vmatprep.subr.bf16.mxu0 %v1301
        %1331 = vmatpush1.bf16.msra.mxu0 %v1300
        %1332 = vmatprep.subr.bf16.mxu0 0
        %1333 = vmatpush2.bf16.msra.mxu0 0
        %1334 = vmatprep.subr.bf16.mxu0 0
        %1335 = vmatpush2.bf16.msra.mxu0 0
        %1336 = vmatprep.subr.bf16.mxu0 0
        %1337 = vmatpush2.bf16.msra.mxu0 0
        %1338 = vmatprep.subr.bf16.mxu0 0
        %1339 = vmatpush2.bf16.msra.mxu0 0
        %1340 = vmatprep.subr.bf16.mxu0 0
        %1341 = vmatpush2.bf16.msra.mxu0 0
        %1342 = vmatprep.subr.bf16.mxu0 0
        %1343 = vmatpush2.bf16.msra.mxu0 0
        %1344 = vmatprep.subr.bf16.mxu0 0
        %1345 = vmatpush2.bf16.msra.mxu0 0
        %1346 = vmatprep.subr.bf16.mxu0 0
        %1347 = vmatpush2.bf16.msra.mxu0 0
        %1348 = vmatprep.mubr.bf16.mxu0 0
        %1349 = vmatmul.mubr.bf16.gmra.mxu0 %v1308
        %v1350 = vpop.f32.mrf.mxu0
        %v1351 = vadd.f32 %v733, %v1350
        %v1352 = vpop.f32.mrf.mxu0
        %v1353 = vadd.f32 %v735, %v1352
        %v1354 = vpop.f32.mrf.mxu0
        %v1355 = vpop.f32.mrf.mxu0
        %1356 = vdwg.mxu0
        %v1357 = vld [vmem:[%s14] sm:$0xf]
        %1359 = vset.pattern.permute.xlu0 0
        %1360 = vperm.xlu0 %1359, %v1357
        %v1361 = vpop.permute.xlu0 %1360
        %v1363 = vmul.f32 %v1351, %v1361
        %v1364 = vmul.f32 %v1353, %v1361
        %v1367 = vcombine.low %v1363, %v1364
        %v1369 = vadd.f32 %v521, %v1367
        %v1370 = vld [vmem:[%s10] sm:$0xf]
        %v1371 = vld [vmem:[%s11] sm:$0xf]
        %v1373 = vcombine.high %v1369, %v1369
        %v1375 = vsel %vm746, %v1369, 0.0
        %v1376 = vrot.slane %v1375, 4
        %v1377 = vadd.f32 %v1375, %v1376
        %v1378 = vrot.slane %v1377, 2
        %v1379 = vadd.f32 %v1377, %v1378
        %v1380 = vrot.slane %v1379, 1
        %v1381 = vadd.f32 %v1379, %v1380
        %v1382 = vsel %vm746, %v1373, 0.0
        %v1383 = vrot.slane %v1382, 4
        %v1384 = vadd.f32 %v1382, %v1383
        %v1385 = vrot.slane %v1384, 2
        %v1386 = vadd.f32 %v1384, %v1385
        %v1387 = vrot.slane %v1386, 1
        %v1388 = vadd.f32 %v1386, %v1387
        %v1389 = vmul.f32 %v1381, %v761
        %v1390 = vmul.f32 %v1388, %v761
        %v1393 = vcombine.low %v1389, %v1390
        %v1395 = vsub.f32 %v1369, %v1393
        %v1396 = vmul.f32 %v1395, %v1395
        %v1398 = vcombine.high %v1396, %v1396
        %v1400 = vsel %vm746, %v1396, 0.0
        %v1401 = vrot.slane %v1400, 4
        %v1402 = vadd.f32 %v1400, %v1401
        %v1403 = vrot.slane %v1402, 2
        %v1404 = vadd.f32 %v1402, %v1403
        %v1405 = vrot.slane %v1404, 1
        %v1406 = vadd.f32 %v1404, %v1405
        %v1407 = vsel %vm746, %v1398, 0.0
        %v1408 = vrot.slane %v1407, 4
        %v1409 = vadd.f32 %v1407, %v1408
        %v1410 = vrot.slane %v1409, 2
        %v1411 = vadd.f32 %v1409, %v1410
        %v1412 = vrot.slane %v1411, 1
        %v1413 = vadd.f32 %v1411, %v1412
        %v1414 = vmul.f32 %v1406, %v761
        %v1415 = vmul.f32 %v1413, %v761
        %v1416 = vadd.f32 %v1414, 1e-06
        %v1417 = vadd.f32 %v1415, 1e-06
        %v1418 = vrsqrt.pop %v1416
        %v1419 = vrsqrt.pop %v1417
        %v1422 = vcombine.low %v1418, %v1419
        %v1424 = vmul.f32 %v1395, %v1422
        %1426 = vset.pattern.permute.xlu0 0
        %1427 = vperm.xlu0 %1426, %v1370
        %v1428 = vpop.permute.xlu0 %1427
        %v1431 = vcombine.high %v1424, %v1424
        %v1433 = vmul.f32 %v1428, %v1424
        %v1434 = vmul.f32 %v1428, %v1431
        %1436 = vset.pattern.permute.xlu0 0
        %1437 = vperm.xlu0 %1436, %v1371
        %v1438 = vpop.permute.xlu0 %1437
        %v1440 = vadd.f32 %v1433, %v1438
        %v1441 = vadd.f32 %v1434, %v1438
        %1442 = vrot.lane.b32.xlu0 %v1440, 17
        %v1443 = vpop.permute.xlu0 %1442
        %1444 = vrot.lane.b32.xlu0 %v1441, 17
        %v1445 = vpop.permute.xlu0 %1444
        %v1446 = vsel %vm819, %v1443, %v1445
        %v1447 = vsel %vm819, %v1445, %v1443
        %v1448 = vmul.f32 %v1447, %v541
        %v1449 = vmul.f32 %v1446, %v542
        %1450 = vrot.lane.b32.xlu0 %v1440, 16
        %v1451 = vpop.permute.xlu0 %1450
        %1452 = vrot.lane.b32.xlu0 %v1441, 16
        %v1453 = vpop.permute.xlu0 %1452
        %v1454 = vsel %vm828, %v1451, %v1453
        %v1455 = vsel %vm828, %v1453, %v1451
        %v1456 = vmul.f32 %v1455, %v553
        %v1457 = vmul.f32 %v1454, %v554
        %1458 = vrot.lane.b32.xlu0 %v1440, 15
        %v1459 = vpop.permute.xlu0 %1458
        %1460 = vrot.lane.b32.xlu0 %v1441, 15
        %v1461 = vpop.permute.xlu0 %1460
        %v1462 = vsel %vm837, %v1459, %v1461
        %v1463 = vsel %vm837, %v1461, %v1459
        %v1464 = vmul.f32 %v1463, %v569
        %v1465 = vmul.f32 %v1462, %v570
        %1466 = vrot.lane.b32.xlu0 %v1440, 1
        %v1467 = vpop.permute.xlu0 %1466
        %1468 = vrot.lane.b32.xlu0 %v1441, 1
        %v1469 = vpop.permute.xlu0 %1468
        %v1470 = vsel %vm846, %v1467, %v1469
        %v1471 = vsel %vm846, %v1469, %v1467
        %v1472 = vmul.f32 %v1471, %v583
        %v1473 = vmul.f32 %v1470, %v584
        %1474 = vrot.lane.b32.xlu0 %v1440, 127
        %v1475 = vpop.permute.xlu0 %1474
        %1476 = vrot.lane.b32.xlu0 %v1441, 127
        %v1477 = vpop.permute.xlu0 %1476
        %v1478 = vsel %vm855, %v1475, %v1477
        %v1479 = vsel %vm855, %v1477, %v1475
        %v1480 = vmul.f32 %v1478, %v597
        %v1481 = vmul.f32 %v1479, %v598
        %1482 = vrot.lane.b32.xlu0 %v1440, 113
        %v1483 = vpop.permute.xlu0 %1482
        %1484 = vrot.lane.b32.xlu0 %v1441, 113
        %v1485 = vpop.permute.xlu0 %1484
        %v1486 = vsel %vm864, %v1483, %v1485
        %v1487 = vsel %vm864, %v1485, %v1483
        %v1488 = vmul.f32 %v1486, %v611
        %v1489 = vmul.f32 %v1487, %v612
        %1490 = vrot.lane.b32.xlu0 %v1440, 112
        %v1491 = vpop.permute.xlu0 %1490
        %1492 = vrot.lane.b32.xlu0 %v1441, 112
        %v1493 = vpop.permute.xlu0 %1492
        %v1494 = vsel %vm873, %v1491, %v1493
        %v1495 = vsel %vm873, %v1493, %v1491
        %v1496 = vmul.f32 %v1494, %v623
        %v1497 = vmul.f32 %v1495, %v624
        %1498 = vrot.lane.b32.xlu0 %v1440, 111
        %v1499 = vpop.permute.xlu0 %1498
        %1500 = vrot.lane.b32.xlu0 %v1441, 111
        %v1501 = vpop.permute.xlu0 %1500
        %v1502 = vsel %vm882, %v1499, %v1501
        %v1503 = vsel %vm882, %v1501, %v1499
        %v1504 = vmul.f32 %v1502, %v637
        %v1505 = vmul.f32 %v1503, %v638
        %v1508 = vrot.slane %v1456, 4
        %v1509 = vrot.slane %v1457, 4
        %v1514 = vrot.slane %v1472, 4
        %v1515 = vrot.slane %v1473, 4
        %v1520 = vrot.slane %v1480, 4
        %v1521 = vrot.slane %v1481, 4
        %v1526 = vrot.slane %v1496, 4
        %v1527 = vrot.slane %v1497, 4
        %v1530 = vsel %vm746, %v1448, %v1508
        %v1531 = vsel %vm746, %v1449, %v1509
        %v1532 = vsel %vm746, %v1464, %v1514
        %v1533 = vsel %vm746, %v1465, %v1515
        %v1534 = vsel %vm746, %v1440, %v1520
        %v1535 = vsel %vm746, %v1441, %v1521
        %v1536 = vsel %vm746, %v1488, %v1526
        %v1537 = vsel %vm746, %v1489, %v1527
        %v1538 = vpack.c.bf16 %v1532, %v1530
        %v1539 = vpack.c.bf16 %v1533, %v1531
        %v1540 = vpack.c.bf16 %v1536, %v1534
        %v1541 = vpack.c.bf16 %v1537, %v1535
        %v1542 = vpack.c.bf16 %v1504, %v1504
        %v1543 = vpack.c.bf16 %v1505, %v1505
        %v1544 = vld [vmem:[%s6] sm:$0xf]
        %v1549 = vrot.slane %v733, 4
        %v1550 = vrot.slane %v737, 4
        %v1551 = vsel %vm746, %v1549, %v1550
        %v1552 = vrot.slane %v735, 4
        %v1553 = vrot.slane %v739, 4
        %v1554 = vsel %vm746, %v1552, %v1553
        %v1558 = vsel %vm926, %v1544, 0
        %v1561 = vsel %vm679, %v1542, 0
        %v1564 = vsel %vm679, %v1543, 0
        %1566 = vmatprep.subr.bf16.mxu0 0
        %1567 = vmatpush1.bf16.msra.mxu0 0
        %1568 = vmatprep.subr.bf16.mxu0 0
        %1569 = vmatpush1.bf16.msra.mxu0 0
        %1570 = vmatprep.subr.bf16.mxu0 0
        %1571 = vmatpush1.bf16.msra.mxu0 0
        %1572 = vmatprep.subr.bf16.mxu0 0
        %1573 = vmatpush1.bf16.msra.mxu0 0
        %1574 = vmatprep.subr.bf16.mxu0 0
        %1575 = vmatpush1.bf16.msra.mxu0 0
        %1576 = vmatprep.subr.bf16.mxu0 %v1564
        %1577 = vmatpush1.bf16.msra.mxu0 %v1561
        %1578 = vmatprep.subr.bf16.mxu0 %v1541
        %1579 = vmatpush1.bf16.msra.mxu0 %v1540
        %1580 = vmatprep.subr.bf16.mxu0 %v1539
        %1581 = vmatpush1.bf16.msra.mxu0 %v1538
        %1582 = vmatprep.subr.bf16.mxu0 0
        %1583 = vmatpush2.bf16.msra.mxu0 0
        %1584 = vmatprep.subr.bf16.mxu0 0
        %1585 = vmatpush2.bf16.msra.mxu0 0
        %1586 = vmatprep.subr.bf16.mxu0 0
        %1587 = vmatpush2.bf16.msra.mxu0 0
        %1588 = vmatprep.subr.bf16.mxu0 0
        %1589 = vmatpush2.bf16.msra.mxu0 0
        %1590 = vmatprep.subr.bf16.mxu0 0
        %1591 = vmatpush2.bf16.msra.mxu0 0
        %1592 = vmatprep.subr.bf16.mxu0 0
        %1593 = vmatpush2.bf16.msra.mxu0 0
        %1594 = vmatprep.subr.bf16.mxu0 0
        %1595 = vmatpush2.bf16.msra.mxu0 0
        %1596 = vmatprep.subr.bf16.mxu0 0
        %1597 = vmatpush2.bf16.msra.mxu0 0
        %1598 = vmatprep.mubr.bf16.mxu0 0
        %1599 = vmatmul.mubr.bf16.gmra.mxu0 %v1558
        %v1600 = vpop.f32.mrf.mxu0
        %v1601 = vadd.f32 %v1551, %v1600
        %v1602 = vpop.f32.mrf.mxu0
        %v1603 = vadd.f32 %v1554, %v1602
        %v1604 = vpop.f32.mrf.mxu0
        %v1605 = vpop.f32.mrf.mxu0
        %1606 = vdwg.mxu0
        %v1609 = vrot.slane %v1601, 4
        %v1610 = vrot.slane %v1603, 4
        %v1613 = vmul.f32 %v1601, %v1609
        %v1614 = vmul.f32 %v1603, %v1610
        %1615 = vrot.lane.b32.xlu0 %v1613, 17
        %v1616 = vpop.permute.xlu0 %1615
        %1617 = vrot.lane.b32.xlu0 %v1614, 17
        %v1618 = vpop.permute.xlu0 %1617
        %v1619 = vsel %vm819, %v1616, %v1618
        %v1620 = vsel %vm819, %v1618, %v1616
        %v1621 = vmul.f32 %v1620, %v541
        %v1622 = vmul.f32 %v1619, %v542
        %1623 = vrot.lane.b32.xlu0 %v1613, 16
        %v1624 = vpop.permute.xlu0 %1623
        %1625 = vrot.lane.b32.xlu0 %v1614, 16
        %v1626 = vpop.permute.xlu0 %1625
        %v1627 = vsel %vm828, %v1624, %v1626
        %v1628 = vsel %vm828, %v1626, %v1624
        %v1629 = vmul.f32 %v1628, %v553
        %v1630 = vmul.f32 %v1627, %v554
        %1631 = vrot.lane.b32.xlu0 %v1613, 15
        %v1632 = vpop.permute.xlu0 %1631
        %1633 = vrot.lane.b32.xlu0 %v1614, 15
        %v1634 = vpop.permute.xlu0 %1633
        %v1635 = vsel %vm837, %v1632, %v1634
        %v1636 = vsel %vm837, %v1634, %v1632
        %v1637 = vmul.f32 %v1636, %v569
        %v1638 = vmul.f32 %v1635, %v570
        %1639 = vrot.lane.b32.xlu0 %v1613, 1
        %v1640 = vpop.permute.xlu0 %1639
        %1641 = vrot.lane.b32.xlu0 %v1614, 1
        %v1642 = vpop.permute.xlu0 %1641
        %v1643 = vsel %vm846, %v1640, %v1642
        %v1644 = vsel %vm846, %v1642, %v1640
        %v1645 = vmul.f32 %v1644, %v583
        %v1646 = vmul.f32 %v1643, %v584
        %1647 = vrot.lane.b32.xlu0 %v1613, 127
        %v1648 = vpop.permute.xlu0 %1647
        %1649 = vrot.lane.b32.xlu0 %v1614, 127
        %v1650 = vpop.permute.xlu0 %1649
        %v1651 = vsel %vm855, %v1648, %v1650
        %v1652 = vsel %vm855, %v1650, %v1648
        %v1653 = vmul.f32 %v1651, %v597
        %v1654 = vmul.f32 %v1652, %v598
        %1655 = vrot.lane.b32.xlu0 %v1613, 113
        %v1656 = vpop.permute.xlu0 %1655
        %1657 = vrot.lane.b32.xlu0 %v1614, 113
        %v1658 = vpop.permute.xlu0 %1657
        %v1659 = vsel %vm864, %v1656, %v1658
        %v1660 = vsel %vm864, %v1658, %v1656
        %v1661 = vmul.f32 %v1659, %v611
        %v1662 = vmul.f32 %v1660, %v612
        %1663 = vrot.lane.b32.xlu0 %v1613, 112
        %v1664 = vpop.permute.xlu0 %1663
        %1665 = vrot.lane.b32.xlu0 %v1614, 112
        %v1666 = vpop.permute.xlu0 %1665
        %v1667 = vsel %vm873, %v1664, %v1666
        %v1668 = vsel %vm873, %v1666, %v1664
        %v1669 = vmul.f32 %v1667, %v623
        %v1670 = vmul.f32 %v1668, %v624
        %1671 = vrot.lane.b32.xlu0 %v1613, 111
        %v1672 = vpop.permute.xlu0 %1671
        %1673 = vrot.lane.b32.xlu0 %v1614, 111
        %v1674 = vpop.permute.xlu0 %1673
        %v1675 = vsel %vm882, %v1672, %v1674
        %v1676 = vsel %vm882, %v1674, %v1672
        %v1677 = vmul.f32 %v1675, %v637
        %v1678 = vmul.f32 %v1676, %v638
        %v1681 = vrot.slane %v1629, 4
        %v1682 = vrot.slane %v1630, 4
        %v1687 = vrot.slane %v1645, 4
        %v1688 = vrot.slane %v1646, 4
        %v1693 = vrot.slane %v1653, 4
        %v1694 = vrot.slane %v1654, 4
        %v1699 = vrot.slane %v1669, 4
        %v1700 = vrot.slane %v1670, 4
        %v1703 = vsel %vm746, %v1621, %v1681
        %v1704 = vsel %vm746, %v1622, %v1682
        %v1705 = vsel %vm746, %v1637, %v1687
        %v1706 = vsel %vm746, %v1638, %v1688
        %v1707 = vsel %vm746, %v1613, %v1693
        %v1708 = vsel %vm746, %v1614, %v1694
        %v1709 = vsel %vm746, %v1661, %v1699
        %v1710 = vsel %vm746, %v1662, %v1700
        %v1711 = vpack.c.bf16 %v1705, %v1703
        %v1712 = vpack.c.bf16 %v1706, %v1704
        %v1713 = vpack.c.bf16 %v1709, %v1707
        %v1714 = vpack.c.bf16 %v1710, %v1708
        %v1715 = vpack.c.bf16 %v1677, %v1677
        %v1716 = vpack.c.bf16 %v1678, %v1678
        %v1717 = vld [vmem:[%s7] sm:$0x3]
        %v1721 = vsel %vm926, %v1717, 0
        %v1724 = vsel %vm679, %v1715, 0
        %v1727 = vsel %vm679, %v1716, 0
        %1729 = vmatprep.subr.bf16.mxu0 0
        %1730 = vmatpush1.bf16.msra.mxu0 0
        %1731 = vmatprep.subr.bf16.mxu0 0
        %1732 = vmatpush1.bf16.msra.mxu0 0
        %1733 = vmatprep.subr.bf16.mxu0 0
        %1734 = vmatpush1.bf16.msra.mxu0 0
        %1735 = vmatprep.subr.bf16.mxu0 0
        %1736 = vmatpush1.bf16.msra.mxu0 0
        %1737 = vmatprep.subr.bf16.mxu0 0
        %1738 = vmatpush1.bf16.msra.mxu0 0
        %1739 = vmatprep.subr.bf16.mxu0 %v1727
        %1740 = vmatpush1.bf16.msra.mxu0 %v1724
        %1741 = vmatprep.subr.bf16.mxu0 %v1714
        %1742 = vmatpush1.bf16.msra.mxu0 %v1713
        %1743 = vmatprep.subr.bf16.mxu0 %v1712
        %1744 = vmatpush1.bf16.msra.mxu0 %v1711
        %1745 = vmatprep.subr.bf16.mxu0 0
        %1746 = vmatpush2.bf16.msra.mxu0 0
        %1747 = vmatprep.subr.bf16.mxu0 0
        %1748 = vmatpush2.bf16.msra.mxu0 0
        %1749 = vmatprep.subr.bf16.mxu0 0
        %1750 = vmatpush2.bf16.msra.mxu0 0
        %1751 = vmatprep.subr.bf16.mxu0 0
        %1752 = vmatpush2.bf16.msra.mxu0 0
        %1753 = vmatprep.subr.bf16.mxu0 0
        %1754 = vmatpush2.bf16.msra.mxu0 0
        %1755 = vmatprep.subr.bf16.mxu0 0
        %1756 = vmatpush2.bf16.msra.mxu0 0
        %1757 = vmatprep.subr.bf16.mxu0 0
        %1758 = vmatpush2.bf16.msra.mxu0 0
        %1759 = vmatprep.subr.bf16.mxu0 0
        %1760 = vmatpush2.bf16.msra.mxu0 0
        %1761 = vmatprep.mubr.bf16.mxu0 0
        %1762 = vmatmul.mubr.bf16.gmra.mxu0 %v1721
        %v1763 = vpop.f32.mrf.mxu0
        %v1764 = vadd.f32 %v1550, %v1763
        %v1765 = vpop.f32.mrf.mxu0
        %v1766 = vadd.f32 %v1553, %v1765
        %v1767 = vpop.f32.mrf.mxu0
        %v1768 = vpop.f32.mrf.mxu0
        %1769 = vdwg.mxu0
        %v1770 = vld [vmem:[%s15] sm:$0xf]
        %1772 = vset.pattern.permute.xlu0 0
        %1773 = vperm.xlu0 %1772, %v1770
        %v1774 = vpop.permute.xlu0 %1773
        %v1776 = vmul.f32 %v1764, %v1774
        %v1777 = vmul.f32 %v1766, %v1774
        %v1780 = vcombine.low %v1776, %v1777
        %v1782 = vadd.f32 %v1369, %v1780
        %1783 = vst [vmem:[%s514] sm:$0xff] %v1782
        %s1784 = sand.u32 %s379, 1
        %s1785 = scalar_lea.sflag [#allocation3], %s1784
        %s1786 = sand.u32 %s379, 1
        %s1787 = smul.addr %s1786, 8
        %s1788 = scalar_lea.vmem [#allocation2], %s1787
        // Predicated region
        $region85: #{tpu_custom_call.1} parent=83 // pred_check
          %p1789 = pneg %p389
        $region86: #{tpu_custom_call.1} parent=83 // pred_check_branch
          %1791 = sbr.rel (%p1789) target = $region88
        $region87: #{tpu_custom_call.1} parent=83 // pred_region
          %s1793 = ssub.s32 128, 128
          %1794 = vsyncadd %s1785, %s1793
          %s1795 = smul.addr %s30, 2
          %s1796 = smul.addr %s1795, 64
          %s1797 = scalar_lea.hbm %s16, %s1796
          %s1799 = sshll.u32 %s1788, 4
          %s1800 = int_to_ptr.vmem [resolvable:$true] %s1799
          %1802 = dma.vmem_to_hbm [thread:$0]  %s1800, 128, %s1797, %s1785
        $region88: #{tpu_custom_call.1} parent=83 // pred_fallthru
          _
      $region84: #{tpu_custom_call.1} parent=5 // pred_fallthru
        _
      %p1803 = scmp.le.s32.totalorder 2, %s25
      // Predicated region
      $region89: #{tpu_custom_call.1} parent=5 // pred_check
        %p1804 = pneg %p1803
      $region90: #{tpu_custom_call.1} parent=5 // pred_check_branch
        %1806 = sbr.rel (%p1804) target = $region92
      $region91: #{tpu_custom_call.1} parent=5 // pred_region
        %s1807 = ssub.s32 %s25, 2
        // Predicated region
        $region93: #{tpu_custom_call.1} parent=91 // pred_check
          %p1808 = pneg %p395
        $region94: #{tpu_custom_call.1} parent=91 // pred_check_branch
          %1810 = sbr.rel (%p1808) target = $region96
        $region95: #{tpu_custom_call.1} parent=91 // pred_region
          %s1811 = sand.u32 %s380, 1
          %s1812 = scalar_lea.sflag [#allocation3], %s1811
          %s1813 = sand.u32 %s380, 1
          %s1814 = smul.addr %s1813, 8
          %s1815 = scalar_lea.vmem [#allocation2], %s1814
          %1816 = dma.done %s1812, 128
        $region96: #{tpu_custom_call.1} parent=91 // pred_fallthru
          _
      $region92: #{tpu_custom_call.1} parent=5 // pred_fallthru
        _
    $region6: #{tpu_custom_call.1} parent=1 // loop_footer
      %s29 = sadd.s32 1, %s25
    $region7: #{tpu_custom_call.1} parent=1 // loop_footer_branch
      %24 = sbr.rel target = $region3
    $region8: #{tpu_custom_call.1} parent=1 // loop_exit
      _
    %1817 = vsyncpa [#allocation3], 1
    %s1818 = scalar_lea.sflag [#allocation3], 1
    %1819 = vsyncpa %s1818, 1

</llo_original>
